<compile_context>
chip_gen: v6e
topology: v6e:2x2x1
jax: 0.10.0
libtpu: 0.0.40
codegen_flags: <defaults>
</compile_context>

<pallas_src>
import functools
import math

import jax
import jax.numpy as jnp
from jax.experimental import pallas as pl
from jax.experimental.pallas import tpu as pltpu

_LN_EPS = 1e-5


# ----------------------------- small helpers --------------------------------
def _round_up(a, b):
    return ((a + b - 1) // b) * b


def _vmem_capacity():
    cap = 64 * 1024 * 1024
    try:
        cap = int(getattr(pltpu.get_tpu_info(), "vmem_capacity_bytes", cap))
    except Exception:  # interpret mode / older runtimes
        pass
    return cap


def _vmem_limit_bytes(request):
    # Leave headroom for Mosaic internal scratch / double buffering.
    ceiling = (3 * _vmem_capacity()) // 4
    floor = min(32 * 1024 * 1024, ceiling)
    return int(max(min(int(request), ceiling), floor))


def _default_tm():
    # v5e/v6e (128 MiB VMEM) -> bigger row tiles; v7x (64 MiB) stays at 256.
    return 512 if _vmem_capacity() >= 96 * 1024 * 1024 else 256


def _choose_tm(M, tm_req):
    # Sublane aligned; keep >= 2 parallel grid steps so both v7x TCs get work.
    cap = max(8, _round_up(-(-M // 2), 8))
    return min(_round_up(tm_req, 8), cap)


def _layernorm_f32(x, w, b):
    mu = jnp.mean(x, axis=-1, keepdims=True)
    xc = x - mu
    var = jnp.mean(xc * xc, axis=-1, keepdims=True)
    return xc * jax.lax.rsqrt(var + _LN_EPS) * w + b


def _erf(x):
    # Abramowitz & Stegun 7.1.26 (|err| <= 1.5e-7): exp + mul/add only, so it
    # lowers on every TPU generation; keeps GELU semantically "exact" (erf).
    a1, a2, a3, a4, a5 = (0.254829592, -0.284496736, 1.421413741,
                          -1.453152027, 1.061405429)
    ax = jnp.abs(x)
    t = 1.0 / (1.0 + 0.3275911 * ax)
    poly = t * (a1 + t * (a2 + t * (a3 + t * (a4 + t * a5))))
    y = 1.0 - poly * jnp.exp(-ax * ax)
    return jnp.where(x < 0, -y, y)


def _gelu_exact(x):
    return 0.5 * x * (1.0 + _erf(x * (1.0 / math.sqrt(2.0))))


# ---------------------------------------------------------------------------
# Kernel 1: qkv = LN1(x) @ Wqkv + bqkv   (fused, lane-dense, bf16 MXU feed)
# ---------------------------------------------------------------------------
def _ln_qkv_kernel(x_ref, g1_ref, beta1_ref, w_ref, b_ref, o_ref):
    x = x_ref[...].astype(jnp.float32)                         # (tm, C)
    xn = _layernorm_f32(x, g1_ref[...], beta1_ref[...])
    qkv = jnp.dot(xn.astype(jnp.bfloat16), w_ref[...],
                  preferred_element_type=jnp.float32) + b_ref[...]
    o_ref[...] = qkv.astype(o_ref.dtype)


def _ln_qkv(x2d, ln_w, ln_b, w_bf, b_f32, *, tm):
    Mp, C = x2d.shape
    C3 = w_bf.shape[1]
    itemsize = jnp.dtype(x2d.dtype).itemsize
    cost = pl.CostEstimate(
        flops=int(2 * Mp * C * C3),
        transcendentals=int(Mp),
        bytes_accessed=int(Mp * C * itemsize + Mp * C3 * 2 + C * C3 * 2))
    est = (2 * tm * C * 4 + 2 * tm * C3 * 2            # double-buffered x / qkv tiles
           + C * C3 * 2 + (C3 + 2 * C) * 4             # resident weight + biases/LN
           + 4 * tm * max(C, C3) * 4)                  # in-kernel f32 intermediates
    return pl.pallas_call(
        _ln_qkv_kernel,
        out_shape=jax.ShapeDtypeStruct((Mp, C3), jnp.bfloat16),
        grid_spec=pltpu.PrefetchScalarGridSpec(
            num_scalar_prefetch=0,
            grid=(Mp // tm,),
            in_specs=[
                pl.BlockSpec((tm, C), lambda i: (i, 0)),   # x rows
                pl.BlockSpec((1, C), lambda i: (0, 0)),    # ln1 weight
                pl.BlockSpec((1, C), lambda i: (0, 0)),    # ln1 bias
                pl.BlockSpec((C, C3), lambda i: (0, 0)),   # Wqkv (bf16, resident)
                pl.BlockSpec((1, C3), lambda i: (0, 0)),   # bqkv (q part pre-scaled)
            ],
            out_specs=pl.BlockSpec((tm, C3), lambda i: (i, 0)),
        ),
        compiler_params=pltpu.CompilerParams(
            dimension_semantics=("parallel",),
            vmem_limit_bytes=_vmem_limit_bytes(2 * est)),
        cost_estimate=cost,
    )(x2d, ln_w.reshape(1, C), ln_b.reshape(1, C), w_bf, b_f32.reshape(1, C3))


# ---------------------------------------------------------------------------
# Kernel 2: per-(batch, head) causal attention.
# TODO(synk): for long sequences add a query-tile grid axis (flash-style running max/sum) so the (T,T) score tile stays VMEM-bounded on v7x.
# ---------------------------------------------------------------------------
def _attn_core_kernel(q_ref, k_ref, v_ref, o_ref):
    q = q_ref[0]                                               # (T, hs) bf16, pre-scaled
    k = k_ref[0]
    s = jax.lax.dot_general(q, k, (((1,), (1,)), ((), ())),
                            preferred_element_type=jnp.float32)  # (T, T) f32
    T = s.shape[0]
    row = jax.lax.broadcasted_iota(jnp.int32, (T, T), 0)
    col = jax.lax.broadcasted_iota(jnp.int32, (T, T), 1)
    s = jnp.where(row >= col, s, jnp.float32(-1e30))
    m = jnp.max(s, axis=-1, keepdims=True)
    p = jnp.exp(s - m)
    p = p * pl.reciprocal(jnp.sum(p, axis=-1, keepdims=True), approx=True)
    y = jnp.dot(p.astype(jnp.bfloat16), v_ref[0],
                preferred_element_type=jnp.float32)
    o_ref[0] = y.astype(o_ref.dtype)


def _attn_core(q, k, v):
    G, T, hs = q.shape

    def spec():
        return pl.BlockSpec((1, T, hs), lambda g: (g, 0, 0))

    cost = pl.CostEstimate(
        flops=int(4 * G * T * T * hs),
        transcendentals=int(G * T * T),
        bytes_accessed=int(4 * G * T * hs * 2))
    est = 4 * 2 * T * hs * 2 + 4 * T * T * 4
    return pl.pallas_call(
        _attn_core_kernel,
        out_shape=jax.ShapeDtypeStruct((G, T, hs), jnp.bfloat16),
        grid_spec=pltpu.PrefetchScalarGridSpec(
            num_scalar_prefetch=0,
            grid=(G,),
            in_specs=[spec(), spec(), spec()],
            out_specs=spec(),
        ),
        compiler_params=pltpu.CompilerParams(
            dimension_semantics=("parallel",),
            vmem_limit_bytes=_vmem_limit_bytes(2 * est)),
        cost_estimate=cost,
    )(q, k, v)


# ---------------------------------------------------------------------------
# Kernel 3: x1 = x + y@Wproj + bproj ; out = x1 + GELU(LN2(x1)@W1+b1)@W2 + b2
# TODO(synk): for very large C/H (resident bf16 weights > ~20 MiB on v7x) reintroduce a hidden-dim reduction grid axis with an f32 accumulator scratch.
# ---------------------------------------------------------------------------
def _proj_ffn_kernel(x_ref, y_ref, wp_ref, bp_ref, g2_ref, beta2_ref,
                     w1_ref, b1_ref, w2_ref, b2_ref, o_ref):
    x = x_ref[...].astype(jnp.float32)                         # (tm, C)
    x1 = x + jnp.dot(y_ref[...], wp_ref[...],
                     preferred_element_type=jnp.float32) + bp_ref[...]
    xn = _layernorm_f32(x1, g2_ref[...], beta2_ref[...])
    h = jnp.dot(xn.astype(jnp.bfloat16), w1_ref[...],
                preferred_element_type=jnp.float32) + b1_ref[...]
    h = _gelu_exact(h)                                         # exact erf GELU
    out = x1 + jnp.dot(h.astype(jnp.bfloat16), w2_ref[...],
                       preferred_element_type=jnp.float32) + b2_ref[...]
    o_ref[...] = out.astype(o_ref.dtype)


def _proj_ffn(x2d, y2d, wp_bf, bp, ln_w, ln_b, w1_bf, b1, w2_bf, b2, *,
              tm, out_dtype):
    Mp, C = x2d.shape
    Hp = w1_bf.shape[1]
    itemsize = jnp.dtype(x2d.dtype).itemsize
    cost = pl.CostEstimate(
        flops=int(2 * Mp * C * C + 4 * Mp * C * Hp),
        transcendentals=int(Mp * Hp + Mp),
        bytes_accessed=int(Mp * C * (2 * itemsize + 2 + 2)
                           + (C * C + 2 * C * Hp) * 2 + (Hp + 5 * C) * 4))
    est = (2 * tm * C * (4 + 2) + 2 * tm * C * 4             # x / y / out tiles
           + (C * C + 2 * C * Hp) * 2 + (Hp + 5 * C) * 4     # resident weights/biases
           + 3 * tm * C * 4 + 2 * tm * Hp * 4)               # f32 intermediates
    return pl.pallas_call(
        _proj_ffn_kernel,
        out_shape=jax.ShapeDtypeStruct((Mp, C), out_dtype),
        grid_spec=pltpu.PrefetchScalarGridSpec(
            num_scalar_prefetch=0,
            grid=(Mp // tm,),
            in_specs=[
                pl.BlockSpec((tm, C), lambda i: (i, 0)),     # x rows (residual)
                pl.BlockSpec((tm, C), lambda i: (i, 0)),     # concat attn heads (bf16)
                pl.BlockSpec((C, C), lambda i: (0, 0)),      # Wproj (bf16, resident)
                pl.BlockSpec((1, C), lambda i: (0, 0)),      # bproj
                pl.BlockSpec((1, C), lambda i: (0, 0)),      # ln2 weight
                pl.BlockSpec((1, C), lambda i: (0, 0)),      # ln2 bias
                pl.BlockSpec((C, Hp), lambda i: (0, 0)),     # W1 (bf16, resident)
                pl.BlockSpec((1, Hp), lambda i: (0, 0)),     # b1
                pl.BlockSpec((Hp, C), lambda i: (0, 0)),     # W2 (bf16, resident)
                pl.BlockSpec((1, C), lambda i: (0, 0)),      # b2
            ],
            out_specs=pl.BlockSpec((tm, C), lambda i: (i, 0)),
        ),
        compiler_params=pltpu.CompilerParams(
            dimension_semantics=("parallel",),
            vmem_limit_bytes=_vmem_limit_bytes(2 * est)),
        cost_estimate=cost,
    )(x2d, y2d, wp_bf, bp.reshape(1, C), ln_w.reshape(1, C), ln_b.reshape(1, C),
      w1_bf, b1.reshape(1, Hp), w2_bf, b2.reshape(1, C))


# ---------------------------------------------------------------------------
# Full Block forward
# ---------------------------------------------------------------------------
# TODO(synk): C / head_size are used as-is (32 / 8 in the test config); padding them to 128 lanes would require masked LayerNorm statistics.
@functools.partial(jax.jit, static_argnames=("n_head",))
def block_forward(x, params, *, n_head):
    B, T, C = x.shape
    hs = C // n_head
    M = B * T
    tm = _choose_tm(M, _default_tm())
    Mp = _round_up(M, tm)

    # ---- weight prep: bf16 MXU feeds, fold 1/sqrt(hs) into the q columns,
    #      zero-pad the FFN hidden dim to a lane-aligned multiple of 128 -----
    scale = 1.0 / math.sqrt(hs)
    col_scale = jnp.concatenate([jnp.full((C,), scale, jnp.float32),
                                 jnp.ones((2 * C,), jnp.float32)])
    wqkv_bf = (params["wqkv"] * col_scale[None, :]).astype(jnp.bfloat16)
    bqkv_s = params["bqkv"].astype(jnp.float32) * col_scale

    H = params["w1"].shape[1]
    Hp = _round_up(H, 128)
    w1, b1, w2 = params["w1"], params["b1"], params["w2"]
    if Hp != H:
        w1 = jnp.pad(w1, ((0, 0), (0, Hp - H)))
        b1 = jnp.pad(b1, ((0, Hp - H),))
        w2 = jnp.pad(w2, ((0, Hp - H), (0, 0)))
    w1_bf = w1.astype(jnp.bfloat16)
    w2_bf = w2.astype(jnp.bfloat16)
    wproj_bf = params["wproj"].astype(jnp.bfloat16)

    x2d = x.reshape(M, C)
    if Mp != M:
        x2d = jnp.pad(x2d, ((0, Mp - M), (0, 0)))

    # ---- 1) LN1 + fused QKV projection --------------------------------------
    qkv = _ln_qkv(x2d, params["ln1_w"], params["ln1_b"], wqkv_bf, bqkv_s, tm=tm)

    # ---- 2) head split (XLA layout plumbing) + per-(batch, head) attention --
    qkv = qkv[:M].reshape(B, T, 3, n_head, hs).transpose(2, 0, 3, 1, 4)
    q = qkv[0].reshape(B * n_head, T, hs)
    k = qkv[1].reshape(B * n_head, T, hs)
    v = qkv[2].reshape(B * n_head, T, hs)
    y = _attn_core(q, k, v)                                    # (B*nh, T, hs) bf16
    y2d = y.reshape(B, n_head, T, hs).transpose(0, 2, 1, 3).reshape(M, C)
    if Mp != M:
        y2d = jnp.pad(y2d, ((0, Mp - M), (0, 0)))

    # ---- 3) out-proj + residual + LN2 + FFN + residual -----------------------
    out2d = _proj_ffn(x2d, y2d, wproj_bf, params["bproj"],
                      params["ln2_w"], params["ln2_b"],
                      w1_bf, b1, w2_bf, params["b2"], tm=tm, out_dtype=x.dtype)
    return out2d[:M].reshape(B, T, C)


# ---------------------------------------------------------------------------
# Pure-JAX f32 reference (mirrors the PyTorch Block in eval mode)
# ---------------------------------------------------------------------------
def _reference_block(x, params, *, n_head):
    def ln(v, w, b):
        mu = v.mean(-1, keepdims=True)
        var = ((v - mu) ** 2).mean(-1, keepdims=True)
        return (v - mu) / jnp.sqrt(var + _LN_EPS) * w + b

    B, T, C = x.shape
    hs = C // n_head
    h = ln(x, params["ln1_w"], params["ln1_b"])
    qkv = h @ params["wqkv"] + params["bqkv"]
    q, k, v = jnp.split(qkv, 3, axis=-1)
    q = q.reshape(B, T, n_head, hs).transpose(0, 2, 1, 3)
    k = k.reshape(B, T, n_head, hs).transpose(0, 2, 1, 3)
    v = v.reshape(B, T, n_head, hs).transpose(0, 2, 1, 3)
    att = jnp.einsum("bhqd,bhkd->bhqk", q, k) / math.sqrt(hs)
    mask = jnp.tril(jnp.ones((T, T), dtype=bool))
    att = jnp.where(mask, att, -jnp.inf)
    att = jax.nn.softmax(att, axis=-1)
    y = jnp.einsum("bhqk,bhkd->bhqd", att, v).transpose(0, 2, 1, 3).reshape(B, T, C)
    x = x + y @ params["wproj"] + params["bproj"]
    h2 = ln(x, params["ln2_w"], params["ln2_b"])
    ff = jax.nn.gelu(h2 @ params["w1"] + params["b1"], approximate=False)
    return x + ff @ params["w2"] + params["b2"]


if __name__ == "__main__":
    # config: n_embd=32, n_head=4, block_size>=8, bias=True, dropout=0.0
    B, T, n_embd, n_head = 2, 8, 32, 4
    hidden = 4 * n_embd

    key = jax.random.PRNGKey(0)
    ks = jax.random.split(key, 12)
    x = jax.random.normal(ks[0], (B, T, n_embd), dtype=jnp.float32)

    def lin_w(k, fan_in, shape):
        # PyTorch Linear stores (out, in); we keep the transposed (in, out)
        # layout so the kernels can do x @ W directly.
        return jax.random.normal(k, shape, dtype=jnp.float32) / jnp.sqrt(fan_in)

    params = {
        "ln1_w": 1.0 + 0.1 * jax.random.normal(ks[1], (n_embd,), jnp.float32),
        "ln1_b": 0.05 * jax.random.normal(ks[2], (n_embd,), jnp.float32),
        "wqkv": lin_w(ks[3], n_embd, (n_embd, 3 * n_embd)),
        "bqkv": 0.02 * jax.random.normal(ks[4], (3 * n_embd,), jnp.float32),
        "wproj": lin_w(ks[5], n_embd, (n_embd, n_embd)),
        "bproj": 0.02 * jax.random.normal(ks[6], (n_embd,), jnp.float32),
        "ln2_w": 1.0 + 0.1 * jax.random.normal(ks[7], (n_embd,), jnp.float32),
        "ln2_b": 0.05 * jax.random.normal(ks[8], (n_embd,), jnp.float32),
        "w1": lin_w(ks[9], n_embd, (n_embd, hidden)),
        "b1": 0.02 * jax.random.normal(ks[10], (hidden,), jnp.float32),
        "w2": lin_w(ks[11], hidden, (hidden, n_embd)),
        "b2": 0.02 * jax.random.normal(ks[0], (n_embd,), jnp.float32),
    }

    out = block_forward(x, params, n_head=n_head)
    jax.block_until_ready(out)

    ref = _reference_block(x, params, n_head=n_head)
    assert out.shape == (B, T, n_embd)
    # All matmuls feed the MXU in bf16 (f32 accumulation / LN / softmax math)
    # -> loosened tolerance vs the pure-f32 reference.
    assert jnp.allclose(out, ref, atol=3e-2, rtol=3e-2), "mismatch vs reference"
    print("KERNEL_OK")
</pallas_src>

<mosaic_0001>
module attributes {stable_mosaic.version = 11 : i64} {
  func.func @_ln_qkv_kernel(%arg0: i32, %arg1: memref<8x32xf32, #tpu.memory_space<vmem>>, %arg2: memref<1x32xf32, #tpu.memory_space<vmem>>, %arg3: memref<1x32xf32, #tpu.memory_space<vmem>>, %arg4: memref<32x96xbf16, #tpu.memory_space<vmem>>, %arg5: memref<1x96xf32, #tpu.memory_space<vmem>>, %arg6: memref<8x96xbf16, #tpu.memory_space<vmem>>) attributes {dimension_semantics = [#tpu.dimension_semantics<parallel>], iteration_bounds = array<i64: 2>, scalar_prefetch = 0 : i64, scratch_operands = 0 : i64, tpu.core_type = #tpu.core_type<tc>, window_params = [{transform_indices = @transform_0, window_bounds = array<i64: 8, 32>}, {pipeline_mode = #tpu.pipeline_mode<synchronous>, transform_indices = @transform_1, window_bounds = array<i64: 1, 32>}, {pipeline_mode = #tpu.pipeline_mode<synchronous>, transform_indices = @transform_2, window_bounds = array<i64: 1, 32>}, {pipeline_mode = #tpu.pipeline_mode<synchronous>, transform_indices = @transform_3, window_bounds = array<i64: 32, 96>}, {pipeline_mode = #tpu.pipeline_mode<synchronous>, transform_indices = @transform_4, window_bounds = array<i64: 1, 96>}, {transform_indices = @transform_5, window_bounds = array<i64: 8, 96>}]} {
    %c0 = arith.constant 0 : index
    %c0_0 = arith.constant 0 : index
    %0 = vector.load %arg1[%c0, %c0_0] : memref<8x32xf32, #tpu.memory_space<vmem>>, vector<8x32xf32>
    %c0_1 = arith.constant 0 : index
    %c0_2 = arith.constant 0 : index
    %1 = vector.load %arg2[%c0_1, %c0_2] : memref<1x32xf32, #tpu.memory_space<vmem>>, vector<1x32xf32>
    %c0_3 = arith.constant 0 : index
    %c0_4 = arith.constant 0 : index
    %2 = vector.load %arg3[%c0_3, %c0_4] : memref<1x32xf32, #tpu.memory_space<vmem>>, vector<1x32xf32>
    %cst = arith.constant dense<0.000000e+00> : vector<8xf32>
    %3 = vector.multi_reduction <add>, %0, %cst [1] : vector<8x32xf32> to vector<8xf32>
    %4 = vector.shape_cast %3 : vector<8xf32> to vector<8x1xf32>
    %cst_5 = arith.constant 3.200000e+01 : f32
    %5 = vector.broadcast %cst_5 : f32 to vector<8x1xf32>
    %6 = arith.divf %4, %5 : vector<8x1xf32>
    %7 = vector.broadcast %6 : vector<8x1xf32> to vector<8x32xf32>
    %8 = arith.subf %0, %7 : vector<8x32xf32>
    %9 = arith.mulf %8, %8 : vector<8x32xf32>
    %cst_6 = arith.constant dense<0.000000e+00> : vector<8xf32>
    %10 = vector.multi_reduction <add>, %9, %cst_6 [1] : vector<8x32xf32> to vector<8xf32>
    %11 = vector.shape_cast %10 : vector<8xf32> to vector<8x1xf32>
    %cst_7 = arith.constant 3.200000e+01 : f32
    %12 = vector.broadcast %cst_7 : f32 to vector<8x1xf32>
    %13 = arith.divf %11, %12 : vector<8x1xf32>
    %cst_8 = arith.constant 9.99999974E-6 : f32
    %14 = vector.broadcast %cst_8 : f32 to vector<8x1xf32>
    %15 = arith.addf %13, %14 : vector<8x1xf32>
    %16 = math.rsqrt %15 : vector<8x1xf32>
    %17 = vector.broadcast %16 : vector<8x1xf32> to vector<8x32xf32>
    %18 = arith.mulf %8, %17 : vector<8x32xf32>
    %19 = vector.broadcast %1 : vector<1x32xf32> to vector<8x32xf32>
    %20 = arith.mulf %18, %19 : vector<8x32xf32>
    %21 = vector.broadcast %2 : vector<1x32xf32> to vector<8x32xf32>
    %22 = arith.addf %20, %21 : vector<8x32xf32>
    %23 = arith.truncf %22 : vector<8x32xf32> to vector<8x32xbf16>
    %c0_9 = arith.constant 0 : index
    %c0_10 = arith.constant 0 : index
    %24 = vector.load %arg4[%c0_9, %c0_10] : memref<32x96xbf16, #tpu.memory_space<vmem>>, vector<32x96xbf16>
    %cst_11 = arith.constant dense<0.000000e+00> : vector<8x96xf32>
    %25 = tpu.matmul %23, %24, %cst_11 {dimension_numbers = #tpu.dot_dimension_numbers<[1], [0], [0], [1], [0, 0, 1, 1], [], []>} : vector<8x32xbf16>, vector<32x96xbf16>, vector<8x96xf32> -> vector<8x96xf32>
    %c0_12 = arith.constant 0 : index
    %c0_13 = arith.constant 0 : index
    %26 = vector.load %arg5[%c0_12, %c0_13] : memref<1x96xf32, #tpu.memory_space<vmem>>, vector<1x96xf32>
    %27 = vector.broadcast %26 : vector<1x96xf32> to vector<8x96xf32>
    %28 = arith.addf %25, %27 : vector<8x96xf32>
    %29 = arith.truncf %28 : vector<8x96xf32> to vector<8x96xbf16>
    %c0_14 = arith.constant 0 : index
    %c0_15 = arith.constant 0 : index
    %30 = vector.load %arg6[%c0_14, %c0_15] : memref<8x96xbf16, #tpu.memory_space<vmem>>, vector<8x96xbf16>
    tpu.vector_store %arg6[%c0_14, %c0_15], %29 {strides = array<i32>} : memref<8x96xbf16, #tpu.memory_space<vmem>>, vector<8x96xbf16>,
    return
  }
  func.func @transform_0(%arg0: i32) -> (i32, i32) {
    %c0_i32 = arith.constant 0 : i32
    %c0_i32_0 = arith.constant 0 : i32
    return %arg0, %c0_i32 : i32, i32
  }
  func.func @transform_1(%arg0: i32) -> (i32, i32) {
    %c0_i32 = arith.constant 0 : i32
    %c0_i32_0 = arith.constant 0 : i32
    %c0_i32_1 = arith.constant 0 : i32
    return %c0_i32, %c0_i32_0 : i32, i32
  }
  func.func @transform_2(%arg0: i32) -> (i32, i32) {
    %c0_i32 = arith.constant 0 : i32
    %c0_i32_0 = arith.constant 0 : i32
    %c0_i32_1 = arith.constant 0 : i32
    return %c0_i32, %c0_i32_0 : i32, i32
  }
  func.func @transform_3(%arg0: i32) -> (i32, i32) {
    %c0_i32 = arith.constant 0 : i32
    %c0_i32_0 = arith.constant 0 : i32
    %c0_i32_1 = arith.constant 0 : i32
    return %c0_i32, %c0_i32_0 : i32, i32
  }
  func.func @transform_4(%arg0: i32) -> (i32, i32) {
    %c0_i32 = arith.constant 0 : i32
    %c0_i32_0 = arith.constant 0 : i32
    %c0_i32_1 = arith.constant 0 : i32
    return %c0_i32, %c0_i32_0 : i32, i32
  }
  func.func @transform_5(%arg0: i32) -> (i32, i32) {
    %c0_i32 = arith.constant 0 : i32
    %c0_i32_0 = arith.constant 0 : i32
    return %arg0, %c0_i32 : i32, i32
  }
}

module attributes {stable_mosaic.version = 11 : i64} {
  func.func @_attn_core_kernel(%arg0: i32, %arg1: memref<1x8x8xbf16, #tpu.memory_space<vmem>>, %arg2: memref<1x8x8xbf16, #tpu.memory_space<vmem>>, %arg3: memref<1x8x8xbf16, #tpu.memory_space<vmem>>, %arg4: memref<1x8x8xbf16, #tpu.memory_space<vmem>>) attributes {dimension_semantics = [#tpu.dimension_semantics<parallel>], iteration_bounds = array<i64: 8>, scalar_prefetch = 0 : i64, scratch_operands = 0 : i64, tpu.core_type = #tpu.core_type<tc>, window_params = [{transform_indices = @transform_0, window_bounds = array<i64: 1, 8, 8>}, {transform_indices = @transform_1, window_bounds = array<i64: 1, 8, 8>}, {transform_indices = @transform_2, window_bounds = array<i64: 1, 8, 8>}, {transform_indices = @transform_3, window_bounds = array<i64: 1, 8, 8>}]} {
    %c0 = arith.constant 0 : index
    %c0_0 = arith.constant 0 : index
    %c0_1 = arith.constant 0 : index
    %0 = vector.load %arg1[%c0, %c0_0, %c0_1] : memref<1x8x8xbf16, #tpu.memory_space<vmem>>, vector<1x8x8xbf16>
    %1 = vector.shape_cast %0 : vector<1x8x8xbf16> to vector<8x8xbf16>
    %c0_2 = arith.constant 0 : index
    %c0_3 = arith.constant 0 : index
    %c0_4 = arith.constant 0 : index
    %2 = vector.load %arg2[%c0_2, %c0_3, %c0_4] : memref<1x8x8xbf16, #tpu.memory_space<vmem>>, vector<1x8x8xbf16>
    %3 = vector.shape_cast %2 : vector<1x8x8xbf16> to vector<8x8xbf16>
    %cst = arith.constant dense<0.000000e+00> : vector<8x8xf32>
    %4 = tpu.matmul %1, %3, %cst {dimension_numbers = #tpu.dot_dimension_numbers<[1], [1], [0], [0], [0, 0, 1, 0], [], []>} : vector<8x8xbf16>, vector<8x8xbf16>, vector<8x8xf32> -> vector<8x8xf32>
    %5 = tpu.iota {dimensions = array<i32: 0>} : vector<8x8xi32>
    %6 = tpu.iota {dimensions = array<i32: 1>} : vector<8x8xi32>
    %7 = arith.cmpi sge, %5, %6 : vector<8x8xi32>
    %cst_5 = arith.constant -1.000000e+30 : f32
    %8 = vector.broadcast %cst_5 : f32 to vector<8x8xf32>
    %9 = arith.select %7, %4, %8 : vector<8x8xi1>, vector<8x8xf32>
    %cst_6 = arith.constant dense<0xFF800000> : vector<8xf32>
    %10 = vector.multi_reduction <maximumf>, %9, %cst_6 [1] : vector<8x8xf32> to vector<8xf32>
    %11 = vector.shape_cast %10 : vector<8xf32> to vector<8x1xf32>
    %12 = vector.broadcast %11 : vector<8x1xf32> to vector<8x8xf32>
    %13 = arith.subf %9, %12 : vector<8x8xf32>
    %14 = math.exp %13 : vector<8x8xf32>
    %cst_7 = arith.constant dense<0.000000e+00> : vector<8xf32>
    %15 = vector.multi_reduction <add>, %14, %cst_7 [1] : vector<8x8xf32> to vector<8xf32>
    %16 = vector.shape_cast %15 : vector<8xf32> to vector<8x1xf32>
    %17 = tpu.reciprocal %16 {approx = true} : vector<8x1xf32> -> vector<8x1xf32>
    %18 = vector.broadcast %17 : vector<8x1xf32> to vector<8x8xf32>
    %19 = arith.mulf %14, %18 : vector<8x8xf32>
    %20 = arith.truncf %19 : vector<8x8xf32> to vector<8x8xbf16>
    %c0_8 = arith.constant 0 : index
    %c0_9 = arith.constant 0 : index
    %c0_10 = arith.constant 0 : index
    %21 = vector.load %arg3[%c0_8, %c0_9, %c0_10] : memref<1x8x8xbf16, #tpu.memory_space<vmem>>, vector<1x8x8xbf16>
    %22 = vector.shape_cast %21 : vector<1x8x8xbf16> to vector<8x8xbf16>
    %cst_11 = arith.constant dense<0.000000e+00> : vector<8x8xf32>
    %23 = tpu.matmul %20, %22, %cst_11 {dimension_numbers = #tpu.dot_dimension_numbers<[1], [0], [0], [1], [0, 0, 1, 1], [], []>} : vector<8x8xbf16>, vector<8x8xbf16>, vector<8x8xf32> -> vector<8x8xf32>
    %24 = arith.truncf %23 : vector<8x8xf32> to vector<8x8xbf16>
    %c0_12 = arith.constant 0 : index
    %c0_13 = arith.constant 0 : index
    %c0_14 = arith.constant 0 : index
    %25 = vector.load %arg4[%c0_12, %c0_13, %c0_14] : memref<1x8x8xbf16, #tpu.memory_space<vmem>>, vector<1x8x8xbf16>
    %26 = vector.shape_cast %25 : vector<1x8x8xbf16> to vector<8x8xbf16>
    %27 = vector.shape_cast %24 : vector<8x8xbf16> to vector<1x8x8xbf16>
    tpu.vector_store %arg4[%c0_12, %c0_13, %c0_14], %27 {strides = array<i32>} : memref<1x8x8xbf16, #tpu.memory_space<vmem>>, vector<1x8x8xbf16>,
    return
  }
  func.func @transform_0(%arg0: i32) -> (i32, i32, i32) {
    %c0_i32 = arith.constant 0 : i32
    %c0_i32_0 = arith.constant 0 : i32
    %c0_i32_1 = arith.constant 0 : i32
    return %arg0, %c0_i32, %c0_i32_0 : i32, i32, i32
  }
  func.func @transform_1(%arg0: i32) -> (i32, i32, i32) {
    %c0_i32 = arith.constant 0 : i32
    %c0_i32_0 = arith.constant 0 : i32
    %c0_i32_1 = arith.constant 0 : i32
    return %arg0, %c0_i32, %c0_i32_0 : i32, i32, i32
  }
  func.func @transform_2(%arg0: i32) -> (i32, i32, i32) {
    %c0_i32 = arith.constant 0 : i32
    %c0_i32_0 = arith.constant 0 : i32
    %c0_i32_1 = arith.constant 0 : i32
    return %arg0, %c0_i32, %c0_i32_0 : i32, i32, i32
  }
  func.func @transform_3(%arg0: i32) -> (i32, i32, i32) {
    %c0_i32 = arith.constant 0 : i32
    %c0_i32_0 = arith.constant 0 : i32
    %c0_i32_1 = arith.constant 0 : i32
    return %arg0, %c0_i32, %c0_i32_0 : i32, i32, i32
  }
}

module attributes {stable_mosaic.version = 11 : i64} {
  func.func @_proj_ffn_kernel(%arg0: i32, %arg1: memref<8x32xf32, #tpu.memory_space<vmem>>, %arg2: memref<8x32xbf16, #tpu.memory_space<vmem>>, %arg3: memref<32x32xbf16, #tpu.memory_space<vmem>>, %arg4: memref<1x32xf32, #tpu.memory_space<vmem>>, %arg5: memref<1x32xf32, #tpu.memory_space<vmem>>, %arg6: memref<1x32xf32, #tpu.memory_space<vmem>>, %arg7: memref<32x128xbf16, #tpu.memory_space<vmem>>, %arg8: memref<1x128xf32, #tpu.memory_space<vmem>>, %arg9: memref<128x32xbf16, #tpu.memory_space<vmem>>, %arg10: memref<1x32xf32, #tpu.memory_space<vmem>>, %arg11: memref<8x32xf32, #tpu.memory_space<vmem>>) attributes {dimension_semantics = [#tpu.dimension_semantics<parallel>], iteration_bounds = array<i64: 2>, scalar_prefetch = 0 : i64, scratch_operands = 0 : i64, tpu.core_type = #tpu.core_type<tc>, window_params = [{transform_indices = @transform_0, window_bounds = array<i64: 8, 32>}, {transform_indices = @transform_1, window_bounds = array<i64: 8, 32>}, {pipeline_mode = #tpu.pipeline_mode<synchronous>, transform_indices = @transform_2, window_bounds = array<i64: 32, 32>}, {pipeline_mode = #tpu.pipeline_mode<synchronous>, transform_indices = @transform_3, window_bounds = array<i64: 1, 32>}, {pipeline_mode = #tpu.pipeline_mode<synchronous>, transform_indices = @transform_4, window_bounds = array<i64: 1, 32>}, {pipeline_mode = #tpu.pipeline_mode<synchronous>, transform_indices = @transform_5, window_bounds = array<i64: 1, 32>}, {pipeline_mode = #tpu.pipeline_mode<synchronous>, transform_indices = @transform_6, window_bounds = array<i64: 32, 128>}, {pipeline_mode = #tpu.pipeline_mode<synchronous>, transform_indices = @transform_7, window_bounds = array<i64: 1, 128>}, {pipeline_mode = #tpu.pipeline_mode<synchronous>, transform_indices = @transform_8, window_bounds = array<i64: 128, 32>}, {pipeline_mode = #tpu.pipeline_mode<synchronous>, transform_indices = @transform_9, window_bounds = array<i64: 1, 32>}, {transform_indices = @transform_10, window_bounds = array<i64: 8, 32>}]} {
    %c0 = arith.constant 0 : index
    %c0_0 = arith.constant 0 : index
    %0 = vector.load %arg1[%c0, %c0_0] : memref<8x32xf32, #tpu.memory_space<vmem>>, vector<8x32xf32>
    %c0_1 = arith.constant 0 : index
    %c0_2 = arith.constant 0 : index
    %1 = vector.load %arg2[%c0_1, %c0_2] : memref<8x32xbf16, #tpu.memory_space<vmem>>, vector<8x32xbf16>
    %c0_3 = arith.constant 0 : index
    %c0_4 = arith.constant 0 : index
    %2 = vector.load %arg3[%c0_3, %c0_4] : memref<32x32xbf16, #tpu.memory_space<vmem>>, vector<32x32xbf16>
    %cst = arith.constant dense<0.000000e+00> : vector<8x32xf32>
    %3 = tpu.matmul %1, %2, %cst {dimension_numbers = #tpu.dot_dimension_numbers<[1], [0], [0], [1], [0, 0, 1, 1], [], []>} : vector<8x32xbf16>, vector<32x32xbf16>, vector<8x32xf32> -> vector<8x32xf32>
    %4 = arith.addf %0, %3 : vector<8x32xf32>
    %c0_5 = arith.constant 0 : index
    %c0_6 = arith.constant 0 : index
    %5 = vector.load %arg4[%c0_5, %c0_6] : memref<1x32xf32, #tpu.memory_space<vmem>>, vector<1x32xf32>
    %6 = vector.broadcast %5 : vector<1x32xf32> to vector<8x32xf32>
    %7 = arith.addf %4, %6 : vector<8x32xf32>
    %c0_7 = arith.constant 0 : index
    %c0_8 = arith.constant 0 : index
    %8 = vector.load %arg5[%c0_7, %c0_8] : memref<1x32xf32, #tpu.memory_space<vmem>>, vector<1x32xf32>
    %c0_9 = arith.constant 0 : index
    %c0_10 = arith.constant 0 : index
    %9 = vector.load %arg6[%c0_9, %c0_10] : memref<1x32xf32, #tpu.memory_space<vmem>>, vector<1x32xf32>
    %cst_11 = arith.constant dense<0.000000e+00> : vector<8xf32>
    %10 = vector.multi_reduction <add>, %7, %cst_11 [1] : vector<8x32xf32> to vector<8xf32>
    %11 = vector.shape_cast %10 : vector<8xf32> to vector<8x1xf32>
    %cst_12 = arith.constant 3.200000e+01 : f32
    %12 = vector.broadcast %cst_12 : f32 to vector<8x1xf32>
    %13 = arith.divf %11, %12 : vector<8x1xf32>
    %14 = vector.broadcast %13 : vector<8x1xf32> to vector<8x32xf32>
    %15 = arith.subf %7, %14 : vector<8x32xf32>
    %16 = arith.mulf %15, %15 : vector<8x32xf32>
    %cst_13 = arith.constant dense<0.000000e+00> : vector<8xf32>
    %17 = vector.multi_reduction <add>, %16, %cst_13 [1] : vector<8x32xf32> to vector<8xf32>
    %18 = vector.shape_cast %17 : vector<8xf32> to vector<8x1xf32>
    %cst_14 = arith.constant 3.200000e+01 : f32
    %19 = vector.broadcast %cst_14 : f32 to vector<8x1xf32>
    %20 = arith.divf %18, %19 : vector<8x1xf32>
    %cst_15 = arith.constant 9.99999974E-6 : f32
    %21 = vector.broadcast %cst_15 : f32 to vector<8x1xf32>
    %22 = arith.addf %20, %21 : vector<8x1xf32>
    %23 = math.rsqrt %22 : vector<8x1xf32>
    %24 = vector.broadcast %23 : vector<8x1xf32> to vector<8x32xf32>
    %25 = arith.mulf %15, %24 : vector<8x32xf32>
    %26 = vector.broadcast %8 : vector<1x32xf32> to vector<8x32xf32>
    %27 = arith.mulf %25, %26 : vector<8x32xf32>
    %28 = vector.broadcast %9 : vector<1x32xf32> to vector<8x32xf32>
    %29 = arith.addf %27, %28 : vector<8x32xf32>
    %30 = arith.truncf %29 : vector<8x32xf32> to vector<8x32xbf16>
    %c0_16 = arith.constant 0 : index
    %c0_17 = arith.constant 0 : index
    %31 = vector.load %arg7[%c0_16, %c0_17] : memref<32x128xbf16, #tpu.memory_space<vmem>>, vector<32x128xbf16>
    %cst_18 = arith.constant dense<0.000000e+00> : vector<8x128xf32>
    %32 = tpu.matmul %30, %31, %cst_18 {dimension_numbers = #tpu.dot_dimension_numbers<[1], [0], [0], [1], [0, 0, 1, 1], [], []>} : vector<8x32xbf16>, vector<32x128xbf16>, vector<8x128xf32> -> vector<8x128xf32>
    %c0_19 = arith.constant 0 : index
    %c0_20 = arith.constant 0 : index
    %33 = vector.load %arg8[%c0_19, %c0_20] : memref<1x128xf32, #tpu.memory_space<vmem>>, vector<1x128xf32>
    %34 = vector.broadcast %33 : vector<1x128xf32> to vector<8x128xf32>
    %35 = arith.addf %32, %34 : vector<8x128xf32>
    %cst_21 = arith.constant 5.000000e-01 : f32
    %36 = vector.broadcast %cst_21 : f32 to vector<8x128xf32>
    %37 = arith.mulf %36, %35 : vector<8x128xf32>
    %cst_22 = arith.constant 0.707106769 : f32
    %38 = vector.broadcast %cst_22 : f32 to vector<8x128xf32>
    %39 = arith.mulf %35, %38 : vector<8x128xf32>
    %40 = math.absf %39 : vector<8x128xf32>
    %cst_23 = arith.constant 0.327591091 : f32
    %41 = vector.broadcast %cst_23 : f32 to vector<8x128xf32>
    %42 = arith.mulf %41, %40 : vector<8x128xf32>
    %cst_24 = arith.constant 1.000000e+00 : f32
    %43 = vector.broadcast %cst_24 : f32 to vector<8x128xf32>
    %44 = arith.addf %43, %42 : vector<8x128xf32>
    %cst_25 = arith.constant 1.000000e+00 : f32
    %45 = vector.broadcast %cst_25 : f32 to vector<8x128xf32>
    %46 = arith.divf %45, %44 : vector<8x128xf32>
    %cst_26 = arith.constant 1.06140542 : f32
    %47 = vector.broadcast %cst_26 : f32 to vector<8x128xf32>
    %48 = arith.mulf %46, %47 : vector<8x128xf32>
    %cst_27 = arith.constant -1.45315206 : f32
    %49 = vector.broadcast %cst_27 : f32 to vector<8x128xf32>
    %50 = arith.addf %49, %48 : vector<8x128xf32>
    %51 = arith.mulf %46, %50 : vector<8x128xf32>
    %cst_28 = arith.constant 1.42141378 : f32
    %52 = vector.broadcast %cst_28 : f32 to vector<8x128xf32>
    %53 = arith.addf %52, %51 : vector<8x128xf32>
    %54 = arith.mulf %46, %53 : vector<8x128xf32>
    %cst_29 = arith.constant -0.284496725 : f32
    %55 = vector.broadcast %cst_29 : f32 to vector<8x128xf32>
    %56 = arith.addf %55, %54 : vector<8x128xf32>
    %57 = arith.mulf %46, %56 : vector<8x128xf32>
    %cst_30 = arith.constant 0.254829586 : f32
    %58 = vector.broadcast %cst_30 : f32 to vector<8x128xf32>
    %59 = arith.addf %58, %57 : vector<8x128xf32>
    %60 = arith.mulf %46, %59 : vector<8x128xf32>
    %cst_31 = arith.constant 0.000000e+00 : f32
    %61 = vector.broadcast %cst_31 : f32 to vector<8x128xf32>
    %62 = arith.subf %61, %40 : vector<8x128xf32>
    %63 = arith.mulf %62, %40 : vector<8x128xf32>
    %64 = math.exp %63 : vector<8x128xf32>
    %65 = arith.mulf %60, %64 : vector<8x128xf32>
    %cst_32 = arith.constant 1.000000e+00 : f32
    %66 = vector.broadcast %cst_32 : f32 to vector<8x128xf32>
    %67 = arith.subf %66, %65 : vector<8x128xf32>
    %cst_33 = arith.constant 0.000000e+00 : f32
    %68 = vector.broadcast %cst_33 : f32 to vector<8x128xf32>
    %69 = arith.cmpf olt, %39, %68 : vector<8x128xf32>
    %cst_34 = arith.constant 0.000000e+00 : f32
    %70 = vector.broadcast %cst_34 : f32 to vector<8x128xf32>
    %71 = arith.subf %70, %67 : vector<8x128xf32>
    %72 = arith.select %69, %71, %67 : vector<8x128xi1>, vector<8x128xf32>
    %cst_35 = arith.constant 1.000000e+00 : f32
    %73 = vector.broadcast %cst_35 : f32 to vector<8x128xf32>
    %74 = arith.addf %73, %72 : vector<8x128xf32>
    %75 = arith.mulf %37, %74 : vector<8x128xf32>
    %76 = arith.truncf %75 : vector<8x128xf32> to vector<8x128xbf16>
    %c0_36 = arith.constant 0 : index
    %c0_37 = arith.constant 0 : index
    %77 = vector.load %arg9[%c0_36, %c0_37] : memref<128x32xbf16, #tpu.memory_space<vmem>>, vector<128x32xbf16>
    %cst_38 = arith.constant dense<0.000000e+00> : vector<8x32xf32>
    %78 = tpu.matmul %76, %77, %cst_38 {dimension_numbers = #tpu.dot_dimension_numbers<[1], [0], [0], [1], [0, 0, 1, 1], [], []>} : vector<8x128xbf16>, vector<128x32xbf16>, vector<8x32xf32> -> vector<8x32xf32>
    %79 = arith.addf %7, %78 : vector<8x32xf32>
    %c0_39 = arith.constant 0 : index
    %c0_40 = arith.constant 0 : index
    %80 = vector.load %arg10[%c0_39, %c0_40] : memref<1x32xf32, #tpu.memory_space<vmem>>, vector<1x32xf32>
    %81 = vector.broadcast %80 : vector<1x32xf32> to vector<8x32xf32>
    %82 = arith.addf %79, %81 : vector<8x32xf32>
    %c0_41 = arith.constant 0 : index
    %c0_42 = arith.constant 0 : index
    %83 = vector.load %arg11[%c0_41, %c0_42] : memref<8x32xf32, #tpu.memory_space<vmem>>, vector<8x32xf32>
    tpu.vector_store %arg11[%c0_41, %c0_42], %82 {strides = array<i32>} : memref<8x32xf32, #tpu.memory_space<vmem>>, vector<8x32xf32>,
    return
  }
  func.func @transform_0(%arg0: i32) -> (i32, i32) {
    %c0_i32 = arith.constant 0 : i32
    %c0_i32_0 = arith.constant 0 : i32
    return %arg0, %c0_i32 : i32, i32
  }
  func.func @transform_1(%arg0: i32) -> (i32, i32) {
    %c0_i32 = arith.constant 0 : i32
    %c0_i32_0 = arith.constant 0 : i32
    return %arg0, %c0_i32 : i32, i32
  }
  func.func @transform_2(%arg0: i32) -> (i32, i32) {
    %c0_i32 = arith.constant 0 : i32
    %c0_i32_0 = arith.constant 0 : i32
    %c0_i32_1 = arith.constant 0 : i32
    return %c0_i32, %c0_i32_0 : i32, i32
  }
  func.func @transform_3(%arg0: i32) -> (i32, i32) {
    %c0_i32 = arith.constant 0 : i32
    %c0_i32_0 = arith.constant 0 : i32
    %c0_i32_1 = arith.constant 0 : i32
    return %c0_i32, %c0_i32_0 : i32, i32
  }
  func.func @transform_4(%arg0: i32) -> (i32, i32) {
    %c0_i32 = arith.constant 0 : i32
    %c0_i32_0 = arith.constant 0 : i32
    %c0_i32_1 = arith.constant 0 : i32
    return %c0_i32, %c0_i32_0 : i32, i32
  }
  func.func @transform_5(%arg0: i32) -> (i32, i32) {
    %c0_i32 = arith.constant 0 : i32
    %c0_i32_0 = arith.constant 0 : i32
    %c0_i32_1 = arith.constant 0 : i32
    return %c0_i32, %c0_i32_0 : i32, i32
  }
  func.func @transform_6(%arg0: i32) -> (i32, i32) {
    %c0_i32 = arith.constant 0 : i32
    %c0_i32_0 = arith.constant 0 : i32
    %c0_i32_1 = arith.constant 0 : i32
    return %c0_i32, %c0_i32_0 : i32, i32
  }
  func.func @transform_7(%arg0: i32) -> (i32, i32) {
    %c0_i32 = arith.constant 0 : i32
    %c0_i32_0 = arith.constant 0 : i32
    %c0_i32_1 = arith.constant 0 : i32
    return %c0_i32, %c0_i32_0 : i32, i32
  }
  func.func @transform_8(%arg0: i32) -> (i32, i32) {
    %c0_i32 = arith.constant 0 : i32
    %c0_i32_0 = arith.constant 0 : i32
    %c0_i32_1 = arith.constant 0 : i32
    return %c0_i32, %c0_i32_0 : i32, i32
  }
  func.func @transform_9(%arg0: i32) -> (i32, i32) {
    %c0_i32 = arith.constant 0 : i32
    %c0_i32_0 = arith.constant 0 : i32
    %c0_i32_1 = arith.constant 0 : i32
    return %c0_i32, %c0_i32_0 : i32, i32
  }
  func.func @transform_10(%arg0: i32) -> (i32, i32) {
    %c0_i32 = arith.constant 0 : i32
    %c0_i32_0 = arith.constant 0 : i32
    return %arg0, %c0_i32 : i32, i32
  }
}

</mosaic_0001>

<llo_original>
// kernel: block_forward.3
$region0: #{block_forward.3}
  #allocation0 [shape = 'u32[]', space=smem, size = 0x4, offset = 0x4, fixed_abs, tag = 'smem constant byte address 0x4 - core index']
  #allocation1 [shape = 'u32[144,128]{1,0:T(1,128)}', space=vmem, size = 0x12000, scoped, tag = 'internal scratch']
  %s0 = inlined_call_operand.vmem [shape: f32[16,32], index: 0, kind: input, shape index: {}]
  %s1 = inlined_call_operand.vmem [shape: f32[1,32], index: 1, kind: input, shape index: {}]
  %s2 = inlined_call_operand.vmem [shape: f32[1,32], index: 2, kind: input, shape index: {}]
  %s3 = inlined_call_operand.vmem [shape: bf16[32,96], index: 3, kind: input, shape index: {}]
  %s4 = inlined_call_operand.vmem [shape: f32[1,96], index: 4, kind: input, shape index: {}]
  %s5 = inlined_call_operand.vmem [shape: bf16[16,96], index: 5, kind: output, shape index: {}]
  %s6 = sld [smem:[#allocation0]]
  $region53: #{block_forward.3} parent=0
    _
  %s8 = ssub.s32 1, %s6
  %s9 = scalar_select 0, %s8, %s6
  loop: start=0, step=1, limit=4
  $region2: #{block_forward.3} parent=0 // loop_pre_header
    _
  $region3: #{block_forward.3} parent=0 // loop_header
    %s11 = sphi 0, %s15
    %p12 = scmp.ge.s32.totalorder %s11, 4
    %s21 = sphi 0, %s23
    %s24 = sphi 0, %s21
    %s25 = sphi 0, %s24
    %s41 = sphi 0, %s25
    %s45 = sphi 0, %s45
    %s47 = sphi 0, %s45
    %s48 = sphi 0, %s47
    %s62 = sphi 0, %s48
    %s66 = sphi 0, %s66
    %s68 = sphi 0, %s66
    %s69 = sphi 0, %s68
    %s83 = sphi 0, %s69
    %s87 = sphi 0, %s87
    %s89 = sphi 0, %s87
    %s90 = sphi 0, %s89
    %s104 = sphi 0, %s90
    %s108 = sphi 0, %s108
    %s110 = sphi 0, %s108
    %s111 = sphi 0, %s110
    %s125 = sphi 0, %s111
    %s131 = sphi 0, %s133
    %s134 = sphi 0, %s131
    %s135 = sphi 0, %s134
    %s151 = sphi 0, %s135
  $region4: #{block_forward.3} parent=0 // loop_header_branch
    %14 = sbr.rel (%p12) target = $region8
  $region5: #{block_forward.3} parent=0 // loop_body
    %s16 = ssub.s32 %s11, 1
    %s17 = ssub.s32 %s11, 2
    %s18 = sadd.s32 %s11, 1
    %s19 = ssub.s32 %s11, %s18
    %p20 = scmp.eq.s32.totalorder %s19, 0
    %s22 = sadd.s32 %s21, 1
    %s23 = scalar_select %p20, %s21, %s22
    %p26 = pneg %p20
    %p27 = scmp.eq.s32.totalorder %s11, 1
    %p28 = por %p26, %p27
    %p29 = scmp.ne.s32.totalorder %s21, %s24
    %p30 = scmp.eq.s32.totalorder %s11, 0
    %p31 = por %p29, %p30
    %p32 = scmp.ne.s32.totalorder %s21, %s24
    %p33 = scmp.eq.s32.totalorder %s16, 1
    %p34 = por %p32, %p33
    %p35 = scmp.ne.s32.totalorder %s24, %s25
    %p36 = scmp.eq.s32.totalorder %s16, 0
    %p37 = por %p35, %p36
    %p38 = scmp.ne.s32.totalorder %s24, %s25
    %p39 = scmp.eq.s32.totalorder %s17, 1
    %p40 = por %p38, %p39
    %p42 = scmp.ne.s32.totalorder %s25, %s41
    %p43 = scmp.eq.s32.totalorder %s17, 0
    %p44 = por %p42, %p43
    %s46 = sadd.s32 %s45, 1
    %p49 = scmp.eq.s32.totalorder %s11, 1
    %p50 = scmp.ne.s32.totalorder %s45, %s47
    %p51 = scmp.eq.s32.totalorder %s11, 0
    %p52 = por %p50, %p51
    %p53 = scmp.ne.s32.totalorder %s45, %s47
    %p54 = scmp.eq.s32.totalorder %s16, 1
    %p55 = por %p53, %p54
    %p56 = scmp.ne.s32.totalorder %s47, %s48
    %p57 = scmp.eq.s32.totalorder %s16, 0
    %p58 = por %p56, %p57
    %p59 = scmp.ne.s32.totalorder %s47, %s48
    %p60 = scmp.eq.s32.totalorder %s17, 1
    %p61 = por %p59, %p60
    %p63 = scmp.ne.s32.totalorder %s48, %s62
    %p64 = scmp.eq.s32.totalorder %s17, 0
    %p65 = por %p63, %p64
    %s67 = sadd.s32 %s66, 1
    %p70 = scmp.eq.s32.totalorder %s11, 1
    %p71 = scmp.ne.s32.totalorder %s66, %s68
    %p72 = scmp.eq.s32.totalorder %s11, 0
    %p73 = por %p71, %p72
    %p74 = scmp.ne.s32.totalorder %s66, %s68
    %p75 = scmp.eq.s32.totalorder %s16, 1
    %p76 = por %p74, %p75
    %p77 = scmp.ne.s32.totalorder %s68, %s69
    %p78 = scmp.eq.s32.totalorder %s16, 0
    %p79 = por %p77, %p78
    %p80 = scmp.ne.s32.totalorder %s68, %s69
    %p81 = scmp.eq.s32.totalorder %s17, 1
    %p82 = por %p80, %p81
    %p84 = scmp.ne.s32.totalorder %s69, %s83
    %p85 = scmp.eq.s32.totalorder %s17, 0
    %p86 = por %p84, %p85
    %s88 = sadd.s32 %s87, 1
    %p91 = scmp.eq.s32.totalorder %s11, 1
    %p92 = scmp.ne.s32.totalorder %s87, %s89
    %p93 = scmp.eq.s32.totalorder %s11, 0
    %p94 = por %p92, %p93
    %p95 = scmp.ne.s32.totalorder %s87, %s89
    %p96 = scmp.eq.s32.totalorder %s16, 1
    %p97 = por %p95, %p96
    %p98 = scmp.ne.s32.totalorder %s89, %s90
    %p99 = scmp.eq.s32.totalorder %s16, 0
    %p100 = por %p98, %p99
    %p101 = scmp.ne.s32.totalorder %s89, %s90
    %p102 = scmp.eq.s32.totalorder %s17, 1
    %p103 = por %p101, %p102
    %p105 = scmp.ne.s32.totalorder %s90, %s104
    %p106 = scmp.eq.s32.totalorder %s17, 0
    %p107 = por %p105, %p106
    %s109 = sadd.s32 %s108, 1
    %p112 = scmp.eq.s32.totalorder %s11, 1
    %p113 = scmp.ne.s32.totalorder %s108, %s110
    %p114 = scmp.eq.s32.totalorder %s11, 0
    %p115 = por %p113, %p114
    %p116 = scmp.ne.s32.totalorder %s108, %s110
    %p117 = scmp.eq.s32.totalorder %s16, 1
    %p118 = por %p116, %p117
    %p119 = scmp.ne.s32.totalorder %s110, %s111
    %p120 = scmp.eq.s32.totalorder %s16, 0
    %p121 = por %p119, %p120
    %p122 = scmp.ne.s32.totalorder %s110, %s111
    %p123 = scmp.eq.s32.totalorder %s17, 1
    %p124 = por %p122, %p123
    %p126 = scmp.ne.s32.totalorder %s111, %s125
    %p127 = scmp.eq.s32.totalorder %s17, 0
    %p128 = por %p126, %p127
    %s129 = ssub.s32 %s11, %s18
    %p130 = scmp.eq.s32.totalorder %s129, 0
    %s132 = sadd.s32 %s131, 1
    %s133 = scalar_select %p130, %s131, %s132
    %p136 = pneg %p130
    %p137 = scmp.eq.s32.totalorder %s11, 1
    %p138 = por %p136, %p137
    %p139 = scmp.ne.s32.totalorder %s131, %s134
    %p140 = scmp.eq.s32.totalorder %s11, 0
    %p141 = por %p139, %p140
    %p142 = scmp.ne.s32.totalorder %s131, %s134
    %p143 = scmp.eq.s32.totalorder %s16, 1
    %p144 = por %p142, %p143
    %p145 = scmp.ne.s32.totalorder %s134, %s135
    %p146 = scmp.eq.s32.totalorder %s16, 0
    %p147 = por %p145, %p146
    %p148 = scmp.ne.s32.totalorder %s134, %s135
    %p149 = scmp.eq.s32.totalorder %s17, 1
    %p150 = por %p148, %p149
    %p152 = scmp.ne.s32.totalorder %s135, %s151
    %p153 = scmp.eq.s32.totalorder %s17, 0
    %p154 = por %p152, %p153
    %p155 = scmp.le.s32.totalorder 1, %s11
    %p156 = scmp.lt.s32.totalorder %s11, 3
    %p157 = pnand %p155, %p156
    %p158 = pneg %p157
    // Predicated region
    $region9: #{block_forward.3} parent=5 // pred_check
      _
    $region10: #{block_forward.3} parent=5 // pred_check_branch
      %160 = sbr.rel (%p157) target = $region12
    $region11: #{block_forward.3} parent=5 // pred_region
      %s161 = ssub.s32 %s11, 1
      // Predicated region
      $region13: #{block_forward.3} parent=11 // pred_check
        %p162 = pneg %p58
      $region14: #{block_forward.3} parent=11 // pred_check_branch
        %164 = sbr.rel (%p162) target = $region16
      $region15: #{block_forward.3} parent=11 // pred_region
        _
      $region16: #{block_forward.3} parent=11 // pred_fallthru
        _
      // Predicated region
      $region17: #{block_forward.3} parent=11 // pred_check
        %p165 = pneg %p79
      $region18: #{block_forward.3} parent=11 // pred_check_branch
        %167 = sbr.rel (%p165) target = $region20
      $region19: #{block_forward.3} parent=11 // pred_region
        _
      $region20: #{block_forward.3} parent=11 // pred_fallthru
        _
      // Predicated region
      $region21: #{block_forward.3} parent=11 // pred_check
        %p168 = pneg %p100
      $region22: #{block_forward.3} parent=11 // pred_check_branch
        %170 = sbr.rel (%p168) target = $region24
      $region23: #{block_forward.3} parent=11 // pred_region
        _
      $region24: #{block_forward.3} parent=11 // pred_fallthru
        _
      // Predicated region
      $region25: #{block_forward.3} parent=11 // pred_check
        %p171 = pneg %p121
      $region26: #{block_forward.3} parent=11 // pred_check_branch
        %173 = sbr.rel (%p171) target = $region28
      $region27: #{block_forward.3} parent=11 // pred_region
        _
      $region28: #{block_forward.3} parent=11 // pred_fallthru
        _
    $region12: #{block_forward.3} parent=5 // pred_fallthru
      _
    %p174 = scmp.lt.s32.totalorder %s11, 2
    // Predicated region
    $region29: #{block_forward.3} parent=5 // pred_check
      %p175 = pneg %p174
    $region30: #{block_forward.3} parent=5 // pred_check_branch
      %177 = sbr.rel (%p175) target = $region32
    $region31: #{block_forward.3} parent=5 // pred_region
      // Predicated region
      $region33: #{block_forward.3} parent=31 // pred_check
        %p178 = pneg %p31
      $region34: #{block_forward.3} parent=31 // pred_check_branch
        %180 = sbr.rel (%p178) target = $region36
      $region35: #{block_forward.3} parent=31 // pred_region
        %p181 = scmp.lt.s32.totalorder %s11, 1
        %s182 = scalar_select %p181, %s11, 1
        %s183 = smul.addr %s182, 8
        %s184 = scalar_lea.vmem %s0, %s183
      $region36: #{block_forward.3} parent=31 // pred_fallthru
        _
    $region32: #{block_forward.3} parent=5 // pred_fallthru
      _
    %p185 = scmp.le.s32.totalorder 1, %s11
    %p186 = scmp.lt.s32.totalorder %s11, 3
    %p187 = pnand %p185, %p186
    %p188 = pneg %p187
    // Predicated region
    $region37: #{block_forward.3} parent=5 // pred_check
      _
    $region38: #{block_forward.3} parent=5 // pred_check_branch
      %190 = sbr.rel (%p187) target = $region40
    $region39: #{block_forward.3} parent=5 // pred_region
      %s191 = ssub.s32 %s11, 1
      %p192 = scmp.lt.s32.totalorder %s16, 1
      %s193 = scalar_select %p192, %s16, 1
      %s194 = smul.addr %s193, 8
      %s195 = scalar_lea.vmem %s0, %s194
      %p196 = pneg %p37
      %p197 = pneg %p34
      %p198 = pneg %p58
      %p199 = pneg %p55
      %p200 = pneg %p79
      %p201 = pneg %p76
      %p202 = pneg %p100
      %p203 = pneg %p97
      %p204 = pneg %p121
      %p205 = pneg %p118
      %p206 = pneg %p147
      %p207 = pneg %p144
      %p208 = scmp.lt.s32.totalorder %s16, 1
      %s209 = scalar_select %p208, %s16, 1
      %s210 = smul.addr %s209, 4
      %s211 = scalar_lea.vmem %s5, %s210
      %p212 = scmp.lt.s32.totalorder %s16, 1
      %s213 = scalar_select %p212, %s16, 1
      %s214 = smul.addr %s213, 8
      %s215 = scalar_lea.vmem %s0, %s214
      %p216 = scmp.lt.s32.totalorder %s16, 1
      %s217 = scalar_select %p216, %s16, 1
      %s218 = smul.addr %s217, 4
      %s219 = scalar_lea.vmem %s5, %s218
      %v221 = vld [vmem:[%s215] sm:$0xff]
      %v222 = vld [vmem:[%s1] sm:$0x1]
      %v223 = vld [vmem:[%s2] sm:$0x1]
      %vm224 = vcmask 261120
      %v225 = vsel %vm224, %v221, 0.0
      %226 = vadd.xlane.f32.xlu0 %v225
      %v227 = vpop.xlane.xlu0 %226
      %v228 = vrcp.pop 32.0
      %v229 = vmul.f32 %v227, %v228
      %v230 = vsub.f32 %v221, %v229
      %v231 = vmul.f32 %v230, %v230
      %v232 = vsel %vm224, %v231, 0.0
      %233 = vadd.xlane.f32.xlu0 %v232
      %v234 = vpop.xlane.xlu0 %233
      %v235 = vmul.f32 %v234, %v228
      %v236 = vadd.f32 %v235, 1e-05
      %v237 = vrsqrt.pop %v236
      %v238 = vmul.f32 %v230, %v237
      %v240 = vlaneseq
      %v241 = vshrl.u32 %v240, 7
      %v242 = vsub.s32 0, %v241
      %v243 = vrot.slane %v222, %v242
      %v245 = vmul.f32 %v238, %v243
      %v247 = vlaneseq
      %v248 = vshrl.u32 %v247, 7
      %v249 = vsub.s32 0, %v248
      %v250 = vrot.slane %v223, %v249
      %v252 = vadd.f32 %v245, %v250
      %v253 = vpack.c.bf16 %v252, %v252
      %v254 = vld [vmem:[%s3] sm:$0xf]
      %v255 = vld [vmem:[%s3 + $0x4] sm:$0xf]
      %v256 = vld [vmem:[%s3 + $0x8] sm:$0xf]
      %v257 = vld [vmem:[%s3 + $0xc] sm:$0xf]
      %v258 = vld [vmem:[%s4] sm:$0x1]
      %v260 = vlaneseq
      %v261 = vshrl.u32 %v260, 7
      %v262 = vsub.s32 0, %v261
      %v263 = vrot.slane %v258, %v262
      %v269 = vunpack.c.l.b16 %v254
      %v270 = vunpack.c.l.b16 %v255
      %v271 = vunpack.c.l.b16 %v256
      %v272 = vunpack.c.l.b16 %v257
      %v273 = vpack.c.b16 %v270, %v269
      %v274 = vpack.c.b16 %v272, %v271
      %v278 = vsel %vm224, %v253, 0
      %280 = vmatprep.subr.bf16.mxu0 0
      %281 = vmatpush1.bf16.msra.mxu0 0
      %282 = vmatprep.subr.bf16.mxu0 0
      %283 = vmatpush1.bf16.msra.mxu0 0
      %284 = vmatprep.subr.bf16.mxu0 0
      %285 = vmatpush1.bf16.msra.mxu0 0
      %286 = vmatprep.subr.bf16.mxu0 0
      %287 = vmatpush1.bf16.msra.mxu0 0
      %288 = vmatprep.subr.bf16.mxu0 0
      %289 = vmatpush1.bf16.msra.mxu0 0
      %290 = vmatprep.subr.bf16.mxu0 0
      %291 = vmatpush1.bf16.msra.mxu0 0
      %292 = vmatprep.subr.bf16.mxu0 0
      %293 = vmatpush1.bf16.msra.mxu0 %v274
      %294 = vmatprep.subr.bf16.mxu0 0
      %295 = vmatpush1.bf16.msra.mxu0 %v273
      %296 = vmatprep.subr.bf16.mxu0 0
      %297 = vmatpush2.bf16.msra.mxu0 0
      %298 = vmatprep.subr.bf16.mxu0 0
      %299 = vmatpush2.bf16.msra.mxu0 0
      %300 = vmatprep.subr.bf16.mxu0 0
      %301 = vmatpush2.bf16.msra.mxu0 0
      %302 = vmatprep.subr.bf16.mxu0 0
      %303 = vmatpush2.bf16.msra.mxu0 0
      %304 = vmatprep.subr.bf16.mxu0 0
      %305 = vmatpush2.bf16.msra.mxu0 0
      %306 = vmatprep.subr.bf16.mxu0 0
      %307 = vmatpush2.bf16.msra.mxu0 0
      %308 = vmatprep.subr.bf16.mxu0 0
      %309 = vmatpush2.bf16.msra.mxu0 0
      %310 = vmatprep.subr.bf16.mxu0 0
      %311 = vmatpush2.bf16.msra.mxu0 0
      %312 = vmatprep.mubr.bf16.mxu0 0
      %313 = vmatmul.mubr.bf16.gmra.mxu0 %v278
      %v314 = vpop.f32.mrf.mxu0
      %v315 = vadd.f32 %v263, %v314
      %v316 = vpop.f32.mrf.mxu0
      %v317 = vpop.f32.mrf.mxu0
      %v318 = vpop.f32.mrf.mxu0
      %319 = vdwg.mxu0
      %v320 = vpack.c.bf16 %v315, %v315
      %vm321 = vcmask 781312
      %322 = vst.msk [vmem:[%s219] sm:$0xf] %vm321, %v320
      %p323 = scmp.lt.s32.totalorder %s16, 1
      %s324 = scalar_select %p323, %s16, 1
      %s325 = smul.addr %s324, 4
      %s326 = scalar_lea.vmem %s5, %s325
      // Predicated region
      $region41: #{block_forward.3} parent=39 // pred_check
        %p327 = pneg %p144
      $region42: #{block_forward.3} parent=39 // pred_check_branch
        %329 = sbr.rel (%p327) target = $region44
      $region43: #{block_forward.3} parent=39 // pred_region
        _
      $region44: #{block_forward.3} parent=39 // pred_fallthru
        _
    $region40: #{block_forward.3} parent=5 // pred_fallthru
      _
    %p330 = scmp.le.s32.totalorder 2, %s11
    // Predicated region
    $region45: #{block_forward.3} parent=5 // pred_check
      %p331 = pneg %p330
    $region46: #{block_forward.3} parent=5 // pred_check_branch
      %333 = sbr.rel (%p331) target = $region48
    $region47: #{block_forward.3} parent=5 // pred_region
      %s334 = ssub.s32 %s11, 2
      // Predicated region
      $region49: #{block_forward.3} parent=47 // pred_check
        %p335 = pneg %p150
      $region50: #{block_forward.3} parent=47 // pred_check_branch
        %337 = sbr.rel (%p335) target = $region52
      $region51: #{block_forward.3} parent=47 // pred_region
        %p338 = scmp.lt.s32.totalorder %s17, 1
        %s339 = scalar_select %p338, %s17, 1
        %s340 = smul.addr %s339, 4
        %s341 = scalar_lea.vmem %s5, %s340
      $region52: #{block_forward.3} parent=47 // pred_fallthru
        _
    $region48: #{block_forward.3} parent=5 // pred_fallthru
      _
  $region6: #{block_forward.3} parent=0 // loop_footer
    %s15 = sadd.s32 1, %s11
  $region7: #{block_forward.3} parent=0 // loop_footer_branch
    %10 = sbr.rel target = $region3
  $region8: #{block_forward.3} parent=0 // loop_exit
    _

// kernel: block_forward.4
$region0: #{block_forward.4}
  #allocation0 [shape = 'u32[]', space=smem, size = 0x4, offset = 0x4, fixed_abs, tag = 'smem constant byte address 0x4 - core index']
  #allocation1 [shape = 'u32[144,128]{1,0:T(1,128)}', space=vmem, size = 0x12000, scoped, tag = 'internal scratch']
  %s0 = inlined_call_operand.vmem [shape: bf16[8,8,8], index: 0, kind: input, shape index: {}]
  %s1 = inlined_call_operand.vmem [shape: bf16[8,8,8], index: 1, kind: input, shape index: {}]
  %s2 = inlined_call_operand.vmem [shape: bf16[8,8,8], index: 2, kind: input, shape index: {}]
  %s3 = inlined_call_operand.vmem [shape: bf16[8,8,8], index: 3, kind: output, shape index: {}]
  %s4 = sld [smem:[#allocation0]]
  $region45: #{block_forward.4} parent=0
    _
  %s6 = ssub.s32 1, %s4
  %s7 = scalar_select 0, %s6, %s4
  loop: start=0, step=1, limit=10
  $region2: #{block_forward.4} parent=0 // loop_pre_header
    _
  $region3: #{block_forward.4} parent=0 // loop_header
    %s9 = sphi 0, %s13
    %p10 = scmp.ge.s32.totalorder %s9, 10
    %s19 = sphi 0, %s21
    %s22 = sphi 0, %s19
    %s23 = sphi 0, %s22
    %s39 = sphi 0, %s23
    %s45 = sphi 0, %s47
    %s48 = sphi 0, %s45
    %s49 = sphi 0, %s48
    %s65 = sphi 0, %s49
    %s71 = sphi 0, %s73
    %s74 = sphi 0, %s71
    %s75 = sphi 0, %s74
    %s91 = sphi 0, %s75
    %s97 = sphi 0, %s99
    %s100 = sphi 0, %s97
    %s101 = sphi 0, %s100
    %s117 = sphi 0, %s101
  $region4: #{block_forward.4} parent=0 // loop_header_branch
    %12 = sbr.rel (%p10) target = $region8
  $region5: #{block_forward.4} parent=0 // loop_body
    %s14 = ssub.s32 %s9, 1
    %s15 = ssub.s32 %s9, 2
    %s16 = sadd.s32 %s9, 1
    %s17 = ssub.s32 %s9, %s16
    %p18 = scmp.eq.s32.totalorder %s17, 0
    %s20 = sadd.s32 %s19, 1
    %s21 = scalar_select %p18, %s19, %s20
    %p24 = pneg %p18
    %p25 = scmp.eq.s32.totalorder %s9, 7
    %p26 = por %p24, %p25
    %p27 = scmp.ne.s32.totalorder %s19, %s22
    %p28 = scmp.eq.s32.totalorder %s9, 0
    %p29 = por %p27, %p28
    %p30 = scmp.ne.s32.totalorder %s19, %s22
    %p31 = scmp.eq.s32.totalorder %s14, 7
    %p32 = por %p30, %p31
    %p33 = scmp.ne.s32.totalorder %s22, %s23
    %p34 = scmp.eq.s32.totalorder %s14, 0
    %p35 = por %p33, %p34
    %p36 = scmp.ne.s32.totalorder %s22, %s23
    %p37 = scmp.eq.s32.totalorder %s15, 7
    %p38 = por %p36, %p37
    %p40 = scmp.ne.s32.totalorder %s23, %s39
    %p41 = scmp.eq.s32.totalorder %s15, 0
    %p42 = por %p40, %p41
    %s43 = ssub.s32 %s9, %s16
    %p44 = scmp.eq.s32.totalorder %s43, 0
    %s46 = sadd.s32 %s45, 1
    %s47 = scalar_select %p44, %s45, %s46
    %p50 = pneg %p44
    %p51 = scmp.eq.s32.totalorder %s9, 7
    %p52 = por %p50, %p51
    %p53 = scmp.ne.s32.totalorder %s45, %s48
    %p54 = scmp.eq.s32.totalorder %s9, 0
    %p55 = por %p53, %p54
    %p56 = scmp.ne.s32.totalorder %s45, %s48
    %p57 = scmp.eq.s32.totalorder %s14, 7
    %p58 = por %p56, %p57
    %p59 = scmp.ne.s32.totalorder %s48, %s49
    %p60 = scmp.eq.s32.totalorder %s14, 0
    %p61 = por %p59, %p60
    %p62 = scmp.ne.s32.totalorder %s48, %s49
    %p63 = scmp.eq.s32.totalorder %s15, 7
    %p64 = por %p62, %p63
    %p66 = scmp.ne.s32.totalorder %s49, %s65
    %p67 = scmp.eq.s32.totalorder %s15, 0
    %p68 = por %p66, %p67
    %s69 = ssub.s32 %s9, %s16
    %p70 = scmp.eq.s32.totalorder %s69, 0
    %s72 = sadd.s32 %s71, 1
    %s73 = scalar_select %p70, %s71, %s72
    %p76 = pneg %p70
    %p77 = scmp.eq.s32.totalorder %s9, 7
    %p78 = por %p76, %p77
    %p79 = scmp.ne.s32.totalorder %s71, %s74
    %p80 = scmp.eq.s32.totalorder %s9, 0
    %p81 = por %p79, %p80
    %p82 = scmp.ne.s32.totalorder %s71, %s74
    %p83 = scmp.eq.s32.totalorder %s14, 7
    %p84 = por %p82, %p83
    %p85 = scmp.ne.s32.totalorder %s74, %s75
    %p86 = scmp.eq.s32.totalorder %s14, 0
    %p87 = por %p85, %p86
    %p88 = scmp.ne.s32.totalorder %s74, %s75
    %p89 = scmp.eq.s32.totalorder %s15, 7
    %p90 = por %p88, %p89
    %p92 = scmp.ne.s32.totalorder %s75, %s91
    %p93 = scmp.eq.s32.totalorder %s15, 0
    %p94 = por %p92, %p93
    %s95 = ssub.s32 %s9, %s16
    %p96 = scmp.eq.s32.totalorder %s95, 0
    %s98 = sadd.s32 %s97, 1
    %s99 = scalar_select %p96, %s97, %s98
    %p102 = pneg %p96
    %p103 = scmp.eq.s32.totalorder %s9, 7
    %p104 = por %p102, %p103
    %p105 = scmp.ne.s32.totalorder %s97, %s100
    %p106 = scmp.eq.s32.totalorder %s9, 0
    %p107 = por %p105, %p106
    %p108 = scmp.ne.s32.totalorder %s97, %s100
    %p109 = scmp.eq.s32.totalorder %s14, 7
    %p110 = por %p108, %p109
    %p111 = scmp.ne.s32.totalorder %s100, %s101
    %p112 = scmp.eq.s32.totalorder %s14, 0
    %p113 = por %p111, %p112
    %p114 = scmp.ne.s32.totalorder %s100, %s101
    %p115 = scmp.eq.s32.totalorder %s15, 7
    %p116 = por %p114, %p115
    %p118 = scmp.ne.s32.totalorder %s101, %s117
    %p119 = scmp.eq.s32.totalorder %s15, 0
    %p120 = por %p118, %p119
    %p121 = scmp.le.s32.totalorder 1, %s9
    %p122 = scmp.lt.s32.totalorder %s9, 9
    %p123 = pnand %p121, %p122
    %p124 = pneg %p123
    // Predicated region
    $region9: #{block_forward.4} parent=5 // pred_check
      _
    $region10: #{block_forward.4} parent=5 // pred_check_branch
      %126 = sbr.rel (%p123) target = $region12
    $region11: #{block_forward.4} parent=5 // pred_region
      %s127 = ssub.s32 %s9, 1
    $region12: #{block_forward.4} parent=5 // pred_fallthru
      _
    %p128 = scmp.lt.s32.totalorder %s9, 8
    // Predicated region
    $region13: #{block_forward.4} parent=5 // pred_check
      %p129 = pneg %p128
    $region14: #{block_forward.4} parent=5 // pred_check_branch
      %131 = sbr.rel (%p129) target = $region16
    $region15: #{block_forward.4} parent=5 // pred_region
      // Predicated region
      $region17: #{block_forward.4} parent=15 // pred_check
        %p132 = pneg %p29
      $region18: #{block_forward.4} parent=15 // pred_check_branch
        %134 = sbr.rel (%p132) target = $region20
      $region19: #{block_forward.4} parent=15 // pred_region
        %p135 = scmp.lt.s32.totalorder %s9, 7
        %s136 = scalar_select %p135, %s9, 7
        %s137 = smul.addr %s136, 4
        %s138 = scalar_lea.vmem %s0, %s137
      $region20: #{block_forward.4} parent=15 // pred_fallthru
        _
      // Predicated region
      $region21: #{block_forward.4} parent=15 // pred_check
        %p139 = pneg %p55
      $region22: #{block_forward.4} parent=15 // pred_check_branch
        %141 = sbr.rel (%p139) target = $region24
      $region23: #{block_forward.4} parent=15 // pred_region
        %p142 = scmp.lt.s32.totalorder %s9, 7
        %s143 = scalar_select %p142, %s9, 7
        %s144 = smul.addr %s143, 4
        %s145 = scalar_lea.vmem %s1, %s144
      $region24: #{block_forward.4} parent=15 // pred_fallthru
        _
      // Predicated region
      $region25: #{block_forward.4} parent=15 // pred_check
        %p146 = pneg %p81
      $region26: #{block_forward.4} parent=15 // pred_check_branch
        %148 = sbr.rel (%p146) target = $region28
      $region27: #{block_forward.4} parent=15 // pred_region
        %p149 = scmp.lt.s32.totalorder %s9, 7
        %s150 = scalar_select %p149, %s9, 7
        %s151 = smul.addr %s150, 4
        %s152 = scalar_lea.vmem %s2, %s151
      $region28: #{block_forward.4} parent=15 // pred_fallthru
        _
    $region16: #{block_forward.4} parent=5 // pred_fallthru
      _
    %p153 = scmp.le.s32.totalorder 1, %s9
    %p154 = scmp.lt.s32.totalorder %s9, 9
    %p155 = pnand %p153, %p154
    %p156 = pneg %p155
    // Predicated region
    $region29: #{block_forward.4} parent=5 // pred_check
      _
    $region30: #{block_forward.4} parent=5 // pred_check_branch
      %158 = sbr.rel (%p155) target = $region32
    $region31: #{block_forward.4} parent=5 // pred_region
      %s159 = ssub.s32 %s9, 1
      %p160 = scmp.lt.s32.totalorder %s14, 7
      %s161 = scalar_select %p160, %s14, 7
      %s162 = smul.addr %s161, 4
      %s163 = scalar_lea.vmem %s0, %s162
      %p164 = pneg %p35
      %p165 = pneg %p32
      %p166 = scmp.lt.s32.totalorder %s14, 7
      %s167 = scalar_select %p166, %s14, 7
      %s168 = smul.addr %s167, 4
      %s169 = scalar_lea.vmem %s1, %s168
      %p170 = pneg %p61
      %p171 = pneg %p58
      %p172 = scmp.lt.s32.totalorder %s14, 7
      %s173 = scalar_select %p172, %s14, 7
      %s174 = smul.addr %s173, 4
      %s175 = scalar_lea.vmem %s2, %s174
      %p176 = pneg %p87
      %p177 = pneg %p84
      %p178 = pneg %p113
      %p179 = pneg %p110
      %p180 = scmp.lt.s32.totalorder %s14, 7
      %s181 = scalar_select %p180, %s14, 7
      %s182 = smul.addr %s181, 4
      %s183 = scalar_lea.vmem %s3, %s182
      %p184 = scmp.lt.s32.totalorder %s14, 7
      %s185 = scalar_select %p184, %s14, 7
      %s186 = smul.addr %s185, 4
      %s187 = scalar_lea.vmem %s0, %s186
      %p188 = scmp.lt.s32.totalorder %s14, 7
      %s189 = scalar_select %p188, %s14, 7
      %s190 = smul.addr %s189, 4
      %s191 = scalar_lea.vmem %s1, %s190
      %p192 = scmp.lt.s32.totalorder %s14, 7
      %s193 = scalar_select %p192, %s14, 7
      %s194 = smul.addr %s193, 4
      %s195 = scalar_lea.vmem %s2, %s194
      %p196 = scmp.lt.s32.totalorder %s14, 7
      %s197 = scalar_select %p196, %s14, 7
      %s198 = smul.addr %s197, 4
      %s199 = scalar_lea.vmem %s3, %s198
      %v201 = vld [vmem:[%s187] sm:$0xf]
      %v202 = vld [vmem:[%s191] sm:$0xf]
      %vm203 = vcmask 64512
      %v205 = vsel %vm203, %v201, 0
      %v208 = vsel %vm203, %v202, 0
      %210 = vmatprep.subr.bf16.mxu0 0
      %211 = vmatpush1.bf16.xpose.msra.mxu0 0
      %212 = vmatprep.subr.bf16.mxu0 0
      %213 = vmatpush1.bf16.xpose.msra.mxu0 0
      %214 = vmatprep.subr.bf16.mxu0 0
      %215 = vmatpush1.bf16.xpose.msra.mxu0 0
      %216 = vmatprep.subr.bf16.mxu0 0
      %217 = vmatpush1.bf16.xpose.msra.mxu0 0
      %218 = vmatprep.subr.bf16.mxu0 0
      %219 = vmatpush1.bf16.xpose.msra.mxu0 0
      %220 = vmatprep.subr.bf16.mxu0 0
      %221 = vmatpush1.bf16.xpose.msra.mxu0 0
      %222 = vmatprep.subr.bf16.mxu0 0
      %223 = vmatpush1.bf16.xpose.msra.mxu0 0
      %224 = vmatprep.subr.bf16.mxu0 0
      %225 = vmatpush1.bf16.xpose.msra.mxu0 %v208
      %226 = vmatprep.subr.bf16.mxu0 0
      %227 = vmatpush2.bf16.xpose.msra.mxu0 0
      %228 = vmatprep.subr.bf16.mxu0 0
      %229 = vmatpush2.bf16.xpose.msra.mxu0 0
      %230 = vmatprep.subr.bf16.mxu0 0
      %231 = vmatpush2.bf16.xpose.msra.mxu0 0
      %232 = vmatprep.subr.bf16.mxu0 0
      %233 = vmatpush2.bf16.xpose.msra.mxu0 0
      %234 = vmatprep.subr.bf16.mxu0 0
      %235 = vmatpush2.bf16.xpose.msra.mxu0 0
      %236 = vmatprep.subr.bf16.mxu0 0
      %237 = vmatpush2.bf16.xpose.msra.mxu0 0
      %238 = vmatprep.subr.bf16.mxu0 0
      %239 = vmatpush2.bf16.xpose.msra.mxu0 0
      %240 = vmatprep.subr.bf16.mxu0 0
      %241 = vmatpush2.bf16.xpose.msra.mxu0 0
      %242 = vmatprep.mubr.bf16.mxu0 0
      %243 = vmatmul.mubr.bf16.gmra.mxu0 %v205
      %v244 = vpop.f32.mrf.mxu0
      %v245 = vadd.f32 0.0, %v244
      %v246 = vpop.f32.mrf.mxu0
      %v247 = vpop.f32.mrf.mxu0
      %v248 = vpop.f32.mrf.mxu0
      %249 = vdwg.mxu0
      %v250 = vlaneseq
      %v251 = vshrl.u32 %v250, 7
      %v252 = vlaneseq
      %v253 = vand.u32 %v252, 127
      %vm254 = vcmp.ge.s32.totalorder %v251, %v253
      %v255 = vsel %vm254, %v245, -1e+30
      %v256 = vsel %vm203, %v255, -inf
      %257 = vmax.xlane.f32.xlu0 %v256
      %v258 = vpop.xlane.xlu0 %257
      %v259 = vsub.f32 %v255, %v258
      %v260 = vmul.f32 %v259, 1.442695
      %v261 = vpow.pop %v260
      %v262 = vsel %vm203, %v261, 0.0
      %263 = vadd.xlane.f32.xlu0 %v262
      %v264 = vpop.xlane.xlu0 %263
      %v265 = vrcp.pop %v264
      %v266 = vmul.f32 %v261, %v265
      %v267 = vpack.c.bf16 %v266, %v266
      %v268 = vld [vmem:[%s195] sm:$0xf]
      %v270 = vsel %vm203, %v267, 0
      %vm272 = vcmask 1043456
      %v274 = vsel %vm272, %v268, 0
      %276 = vmatprep.subr.bf16.mxu0 0
      %277 = vmatpush1.bf16.msra.mxu0 0
      %278 = vmatprep.subr.bf16.mxu0 0
      %279 = vmatpush1.bf16.msra.mxu0 0
      %280 = vmatprep.subr.bf16.mxu0 0
      %281 = vmatpush1.bf16.msra.mxu0 0
      %282 = vmatprep.subr.bf16.mxu0 0
      %283 = vmatpush1.bf16.msra.mxu0 0
      %284 = vmatprep.subr.bf16.mxu0 0
      %285 = vmatpush1.bf16.msra.mxu0 0
      %286 = vmatprep.subr.bf16.mxu0 0
      %287 = vmatpush1.bf16.msra.mxu0 0
      %288 = vmatprep.subr.bf16.mxu0 0
      %289 = vmatpush1.bf16.msra.mxu0 0
      %290 = vmatprep.subr.bf16.mxu0 0
      %291 = vmatpush1.bf16.msra.mxu0 %v274
      %292 = vmatprep.subr.bf16.mxu0 0
      %293 = vmatpush2.bf16.msra.mxu0 0
      %294 = vmatprep.subr.bf16.mxu0 0
      %295 = vmatpush2.bf16.msra.mxu0 0
      %296 = vmatprep.subr.bf16.mxu0 0
      %297 = vmatpush2.bf16.msra.mxu0 0
      %298 = vmatprep.subr.bf16.mxu0 0
      %299 = vmatpush2.bf16.msra.mxu0 0
      %300 = vmatprep.subr.bf16.mxu0 0
      %301 = vmatpush2.bf16.msra.mxu0 0
      %302 = vmatprep.subr.bf16.mxu0 0
      %303 = vmatpush2.bf16.msra.mxu0 0
      %304 = vmatprep.subr.bf16.mxu0 0
      %305 = vmatpush2.bf16.msra.mxu0 0
      %306 = vmatprep.subr.bf16.mxu0 0
      %307 = vmatpush2.bf16.msra.mxu0 0
      %308 = vmatprep.mubr.bf16.mxu0 0
      %309 = vmatmul.mubr.bf16.gmra.mxu0 %v270
      %v310 = vpop.f32.mrf.mxu0
      %v311 = vadd.f32 0.0, %v310
      %v312 = vpop.f32.mrf.mxu0
      %v313 = vpop.f32.mrf.mxu0
      %v314 = vpop.f32.mrf.mxu0
      %315 = vdwg.mxu0
      %v316 = vpack.c.bf16 %v311, %v311
      %vm317 = vcmask 60416
      %318 = vst.msk [vmem:[%s199] sm:$0xf] %vm317, %v316
      %p319 = scmp.lt.s32.totalorder %s14, 7
      %s320 = scalar_select %p319, %s14, 7
      %s321 = smul.addr %s320, 4
      %s322 = scalar_lea.vmem %s3, %s321
      // Predicated region
      $region33: #{block_forward.4} parent=31 // pred_check
        %p323 = pneg %p110
      $region34: #{block_forward.4} parent=31 // pred_check_branch
        %325 = sbr.rel (%p323) target = $region36
      $region35: #{block_forward.4} parent=31 // pred_region
        _
      $region36: #{block_forward.4} parent=31 // pred_fallthru
        _
    $region32: #{block_forward.4} parent=5 // pred_fallthru
      _
    %p326 = scmp.le.s32.totalorder 2, %s9
    // Predicated region
    $region37: #{block_forward.4} parent=5 // pred_check
      %p327 = pneg %p326
    $region38: #{block_forward.4} parent=5 // pred_check_branch
      %329 = sbr.rel (%p327) target = $region40
    $region39: #{block_forward.4} parent=5 // pred_region
      %s330 = ssub.s32 %s9, 2
      // Predicated region
      $region41: #{block_forward.4} parent=39 // pred_check
        %p331 = pneg %p116
      $region42: #{block_forward.4} parent=39 // pred_check_branch
        %333 = sbr.rel (%p331) target = $region44
      $region43: #{block_forward.4} parent=39 // pred_region
        %p334 = scmp.lt.s32.totalorder %s15, 7
        %s335 = scalar_select %p334, %s15, 7
        %s336 = smul.addr %s335, 4
        %s337 = scalar_lea.vmem %s3, %s336
      $region44: #{block_forward.4} parent=39 // pred_fallthru
        _
    $region40: #{block_forward.4} parent=5 // pred_fallthru
      _
  $region6: #{block_forward.4} parent=0 // loop_footer
    %s13 = sadd.s32 1, %s9
  $region7: #{block_forward.4} parent=0 // loop_footer_branch
    %8 = sbr.rel target = $region3
  $region8: #{block_forward.4} parent=0 // loop_exit
    _

// kernel: block_forward.5
$region0: #{block_forward.5}
  #allocation0 [shape = 'u32[]', space=smem, size = 0x4, offset = 0x4, fixed_abs, tag = 'smem constant byte address 0x4 - core index']
  #allocation1 [shape = 'u32[144,128]{1,0:T(1,128)}', space=vmem, size = 0x12000, scoped, tag = 'internal scratch']
  %s0 = inlined_call_operand.vmem [shape: f32[16,32], index: 0, kind: input, shape index: {}]
  %s1 = inlined_call_operand.vmem [shape: bf16[16,32], index: 1, kind: input, shape index: {}]
  %s2 = inlined_call_operand.vmem [shape: bf16[32,32], index: 2, kind: input, shape index: {}]
  %s3 = inlined_call_operand.vmem [shape: f32[1,32], index: 3, kind: input, shape index: {}]
  %s4 = inlined_call_operand.vmem [shape: f32[1,32], index: 4, kind: input, shape index: {}]
  %s5 = inlined_call_operand.vmem [shape: f32[1,32], index: 5, kind: input, shape index: {}]
  %s6 = inlined_call_operand.vmem [shape: bf16[32,128], index: 6, kind: input, shape index: {}]
  %s7 = inlined_call_operand.vmem [shape: f32[1,128], index: 7, kind: input, shape index: {}]
  %s8 = inlined_call_operand.vmem [shape: bf16[128,32], index: 8, kind: input, shape index: {}]
  %s9 = inlined_call_operand.vmem [shape: f32[1,32], index: 9, kind: input, shape index: {}]
  %s10 = inlined_call_operand.hbm [shape: f32[16,32], index: 10, kind: output, shape index: {}]
  %s11 = sld [smem:[#allocation0]]
  $region73: #{block_forward.5} parent=0
    _
  %s13 = ssub.s32 1, %s11
  %s14 = scalar_select 0, %s13, %s11
  $region1: #{block_forward.5} parent=0
    #allocation2 [shape = 'u8[8192]{0}', space=vmem, size = 0x2000, scoped, tag = 'output window, operand 0']
    #allocation3 [shape = 's32[2]{0}', space=sflag, size = 0x8, scoped, tag = 'scoped memory for block_forward.5']
    %15 = vsyncpa [#allocation3], 0
    %s16 = scalar_lea.sflag [#allocation3], 1
    %17 = vsyncpa %s16, 0
    loop: start=0, step=1, limit=4
    $region2: #{block_forward.5} parent=1 // loop_pre_header
      _
    $region3: #{block_forward.5} parent=1 // loop_header
      %s19 = sphi 0, %s23
      %p20 = scmp.ge.s32.totalorder %s19, 4
      %s29 = sphi 0, %s31
      %s32 = sphi 0, %s29
      %s33 = sphi 0, %s32
      %s49 = sphi 0, %s33
      %s55 = sphi 0, %s57
      %s58 = sphi 0, %s55
      %s59 = sphi 0, %s58
      %s75 = sphi 0, %s59
      %s79 = sphi 0, %s79
      %s81 = sphi 0, %s79
      %s82 = sphi 0, %s81
      %s96 = sphi 0, %s82
      %s100 = sphi 0, %s100
      %s102 = sphi 0, %s100
      %s103 = sphi 0, %s102
      %s117 = sphi 0, %s103
      %s121 = sphi 0, %s121
      %s123 = sphi 0, %s121
      %s124 = sphi 0, %s123
      %s138 = sphi 0, %s124
      %s142 = sphi 0, %s142
      %s144 = sphi 0, %s142
      %s145 = sphi 0, %s144
      %s159 = sphi 0, %s145
      %s163 = sphi 0, %s163
      %s165 = sphi 0, %s163
      %s166 = sphi 0, %s165
      %s180 = sphi 0, %s166
      %s184 = sphi 0, %s184
      %s186 = sphi 0, %s184
      %s187 = sphi 0, %s186
      %s201 = sphi 0, %s187
      %s205 = sphi 0, %s205
      %s207 = sphi 0, %s205
      %s208 = sphi 0, %s207
      %s222 = sphi 0, %s208
      %s226 = sphi 0, %s226
      %s228 = sphi 0, %s226
      %s229 = sphi 0, %s228
      %s243 = sphi 0, %s229
      %s249 = sphi 0, %s251
      %s252 = sphi 0, %s249
      %s253 = sphi 0, %s252
      %s269 = sphi 0, %s253
    $region4: #{block_forward.5} parent=1 // loop_header_branch
      %22 = sbr.rel (%p20) target = $region8
    $region5: #{block_forward.5} parent=1 // loop_body
      %s24 = ssub.s32 %s19, 1
      %s25 = ssub.s32 %s19, 2
      %s26 = sadd.s32 %s19, 1
      %s27 = ssub.s32 %s19, %s26
      %p28 = scmp.eq.s32.totalorder %s27, 0
      %s30 = sadd.s32 %s29, 1
      %s31 = scalar_select %p28, %s29, %s30
      %p34 = pneg %p28
      %p35 = scmp.eq.s32.totalorder %s19, 1
      %p36 = por %p34, %p35
      %p37 = scmp.ne.s32.totalorder %s29, %s32
      %p38 = scmp.eq.s32.totalorder %s19, 0
      %p39 = por %p37, %p38
      %p40 = scmp.ne.s32.totalorder %s29, %s32
      %p41 = scmp.eq.s32.totalorder %s24, 1
      %p42 = por %p40, %p41
      %p43 = scmp.ne.s32.totalorder %s32, %s33
      %p44 = scmp.eq.s32.totalorder %s24, 0
      %p45 = por %p43, %p44
      %p46 = scmp.ne.s32.totalorder %s32, %s33
      %p47 = scmp.eq.s32.totalorder %s25, 1
      %p48 = por %p46, %p47
      %p50 = scmp.ne.s32.totalorder %s33, %s49
      %p51 = scmp.eq.s32.totalorder %s25, 0
      %p52 = por %p50, %p51
      %s53 = ssub.s32 %s19, %s26
      %p54 = scmp.eq.s32.totalorder %s53, 0
      %s56 = sadd.s32 %s55, 1
      %s57 = scalar_select %p54, %s55, %s56
      %p60 = pneg %p54
      %p61 = scmp.eq.s32.totalorder %s19, 1
      %p62 = por %p60, %p61
      %p63 = scmp.ne.s32.totalorder %s55, %s58
      %p64 = scmp.eq.s32.totalorder %s19, 0
      %p65 = por %p63, %p64
      %p66 = scmp.ne.s32.totalorder %s55, %s58
      %p67 = scmp.eq.s32.totalorder %s24, 1
      %p68 = por %p66, %p67
      %p69 = scmp.ne.s32.totalorder %s58, %s59
      %p70 = scmp.eq.s32.totalorder %s24, 0
      %p71 = por %p69, %p70
      %p72 = scmp.ne.s32.totalorder %s58, %s59
      %p73 = scmp.eq.s32.totalorder %s25, 1
      %p74 = por %p72, %p73
      %p76 = scmp.ne.s32.totalorder %s59, %s75
      %p77 = scmp.eq.s32.totalorder %s25, 0
      %p78 = por %p76, %p77
      %s80 = sadd.s32 %s79, 1
      %p83 = scmp.eq.s32.totalorder %s19, 1
      %p84 = scmp.ne.s32.totalorder %s79, %s81
      %p85 = scmp.eq.s32.totalorder %s19, 0
      %p86 = por %p84, %p85
      %p87 = scmp.ne.s32.totalorder %s79, %s81
      %p88 = scmp.eq.s32.totalorder %s24, 1
      %p89 = por %p87, %p88
      %p90 = scmp.ne.s32.totalorder %s81, %s82
      %p91 = scmp.eq.s32.totalorder %s24, 0
      %p92 = por %p90, %p91
      %p93 = scmp.ne.s32.totalorder %s81, %s82
      %p94 = scmp.eq.s32.totalorder %s25, 1
      %p95 = por %p93, %p94
      %p97 = scmp.ne.s32.totalorder %s82, %s96
      %p98 = scmp.eq.s32.totalorder %s25, 0
      %p99 = por %p97, %p98
      %s101 = sadd.s32 %s100, 1
      %p104 = scmp.eq.s32.totalorder %s19, 1
      %p105 = scmp.ne.s32.totalorder %s100, %s102
      %p106 = scmp.eq.s32.totalorder %s19, 0
      %p107 = por %p105, %p106
      %p108 = scmp.ne.s32.totalorder %s100, %s102
      %p109 = scmp.eq.s32.totalorder %s24, 1
      %p110 = por %p108, %p109
      %p111 = scmp.ne.s32.totalorder %s102, %s103
      %p112 = scmp.eq.s32.totalorder %s24, 0
      %p113 = por %p111, %p112
      %p114 = scmp.ne.s32.totalorder %s102, %s103
      %p115 = scmp.eq.s32.totalorder %s25, 1
      %p116 = por %p114, %p115
      %p118 = scmp.ne.s32.totalorder %s103, %s117
      %p119 = scmp.eq.s32.totalorder %s25, 0
      %p120 = por %p118, %p119
      %s122 = sadd.s32 %s121, 1
      %p125 = scmp.eq.s32.totalorder %s19, 1
      %p126 = scmp.ne.s32.totalorder %s121, %s123
      %p127 = scmp.eq.s32.totalorder %s19, 0
      %p128 = por %p126, %p127
      %p129 = scmp.ne.s32.totalorder %s121, %s123
      %p130 = scmp.eq.s32.totalorder %s24, 1
      %p131 = por %p129, %p130
      %p132 = scmp.ne.s32.totalorder %s123, %s124
      %p133 = scmp.eq.s32.totalorder %s24, 0
      %p134 = por %p132, %p133
      %p135 = scmp.ne.s32.totalorder %s123, %s124
      %p136 = scmp.eq.s32.totalorder %s25, 1
      %p137 = por %p135, %p136
      %p139 = scmp.ne.s32.totalorder %s124, %s138
      %p140 = scmp.eq.s32.totalorder %s25, 0
      %p141 = por %p139, %p140
      %s143 = sadd.s32 %s142, 1
      %p146 = scmp.eq.s32.totalorder %s19, 1
      %p147 = scmp.ne.s32.totalorder %s142, %s144
      %p148 = scmp.eq.s32.totalorder %s19, 0
      %p149 = por %p147, %p148
      %p150 = scmp.ne.s32.totalorder %s142, %s144
      %p151 = scmp.eq.s32.totalorder %s24, 1
      %p152 = por %p150, %p151
      %p153 = scmp.ne.s32.totalorder %s144, %s145
      %p154 = scmp.eq.s32.totalorder %s24, 0
      %p155 = por %p153, %p154
      %p156 = scmp.ne.s32.totalorder %s144, %s145
      %p157 = scmp.eq.s32.totalorder %s25, 1
      %p158 = por %p156, %p157
      %p160 = scmp.ne.s32.totalorder %s145, %s159
      %p161 = scmp.eq.s32.totalorder %s25, 0
      %p162 = por %p160, %p161
      %s164 = sadd.s32 %s163, 1
      %p167 = scmp.eq.s32.totalorder %s19, 1
      %p168 = scmp.ne.s32.totalorder %s163, %s165
      %p169 = scmp.eq.s32.totalorder %s19, 0
      %p170 = por %p168, %p169
      %p171 = scmp.ne.s32.totalorder %s163, %s165
      %p172 = scmp.eq.s32.totalorder %s24, 1
      %p173 = por %p171, %p172
      %p174 = scmp.ne.s32.totalorder %s165, %s166
      %p175 = scmp.eq.s32.totalorder %s24, 0
      %p176 = por %p174, %p175
      %p177 = scmp.ne.s32.totalorder %s165, %s166
      %p178 = scmp.eq.s32.totalorder %s25, 1
      %p179 = por %p177, %p178
      %p181 = scmp.ne.s32.totalorder %s166, %s180
      %p182 = scmp.eq.s32.totalorder %s25, 0
      %p183 = por %p181, %p182
      %s185 = sadd.s32 %s184, 1
      %p188 = scmp.eq.s32.totalorder %s19, 1
      %p189 = scmp.ne.s32.totalorder %s184, %s186
      %p190 = scmp.eq.s32.totalorder %s19, 0
      %p191 = por %p189, %p190
      %p192 = scmp.ne.s32.totalorder %s184, %s186
      %p193 = scmp.eq.s32.totalorder %s24, 1
      %p194 = por %p192, %p193
      %p195 = scmp.ne.s32.totalorder %s186, %s187
      %p196 = scmp.eq.s32.totalorder %s24, 0
      %p197 = por %p195, %p196
      %p198 = scmp.ne.s32.totalorder %s186, %s187
      %p199 = scmp.eq.s32.totalorder %s25, 1
      %p200 = por %p198, %p199
      %p202 = scmp.ne.s32.totalorder %s187, %s201
      %p203 = scmp.eq.s32.totalorder %s25, 0
      %p204 = por %p202, %p203
      %s206 = sadd.s32 %s205, 1
      %p209 = scmp.eq.s32.totalorder %s19, 1
      %p210 = scmp.ne.s32.totalorder %s205, %s207
      %p211 = scmp.eq.s32.totalorder %s19, 0
      %p212 = por %p210, %p211
      %p213 = scmp.ne.s32.totalorder %s205, %s207
      %p214 = scmp.eq.s32.totalorder %s24, 1
      %p215 = por %p213, %p214
      %p216 = scmp.ne.s32.totalorder %s207, %s208
      %p217 = scmp.eq.s32.totalorder %s24, 0
      %p218 = por %p216, %p217
      %p219 = scmp.ne.s32.totalorder %s207, %s208
      %p220 = scmp.eq.s32.totalorder %s25, 1
      %p221 = por %p219, %p220
      %p223 = scmp.ne.s32.totalorder %s208, %s222
      %p224 = scmp.eq.s32.totalorder %s25, 0
      %p225 = por %p223, %p224
      %s227 = sadd.s32 %s226, 1
      %p230 = scmp.eq.s32.totalorder %s19, 1
      %p231 = scmp.ne.s32.totalorder %s226, %s228
      %p232 = scmp.eq.s32.totalorder %s19, 0
      %p233 = por %p231, %p232
      %p234 = scmp.ne.s32.totalorder %s226, %s228
      %p235 = scmp.eq.s32.totalorder %s24, 1
      %p236 = por %p234, %p235
      %p237 = scmp.ne.s32.totalorder %s228, %s229
      %p238 = scmp.eq.s32.totalorder %s24, 0
      %p239 = por %p237, %p238
      %p240 = scmp.ne.s32.totalorder %s228, %s229
      %p241 = scmp.eq.s32.totalorder %s25, 1
      %p242 = por %p240, %p241
      %p244 = scmp.ne.s32.totalorder %s229, %s243
      %p245 = scmp.eq.s32.totalorder %s25, 0
      %p246 = por %p244, %p245
      %s247 = ssub.s32 %s19, %s26
      %p248 = scmp.eq.s32.totalorder %s247, 0
      %s250 = sadd.s32 %s249, 1
      %s251 = scalar_select %p248, %s249, %s250
      %p254 = pneg %p248
      %p255 = scmp.eq.s32.totalorder %s19, 1
      %p256 = por %p254, %p255
      %p257 = scmp.ne.s32.totalorder %s249, %s252
      %p258 = scmp.eq.s32.totalorder %s19, 0
      %p259 = por %p257, %p258
      %p260 = scmp.ne.s32.totalorder %s249, %s252
      %p261 = scmp.eq.s32.totalorder %s24, 1
      %p262 = por %p260, %p261
      %p263 = scmp.ne.s32.totalorder %s252, %s253
      %p264 = scmp.eq.s32.totalorder %s24, 0
      %p265 = por %p263, %p264
      %p266 = scmp.ne.s32.totalorder %s252, %s253
      %p267 = scmp.eq.s32.totalorder %s25, 1
      %p268 = por %p266, %p267
      %p270 = scmp.ne.s32.totalorder %s253, %s269
      %p271 = scmp.eq.s32.totalorder %s25, 0
      %p272 = por %p270, %p271
      %p273 = scmp.le.s32.totalorder 1, %s19
      %p274 = scmp.lt.s32.totalorder %s19, 3
      %p275 = pnand %p273, %p274
      %p276 = pneg %p275
      // Predicated region
      $region9: #{block_forward.5} parent=5 // pred_check
        _
      $region10: #{block_forward.5} parent=5 // pred_check_branch
        %278 = sbr.rel (%p275) target = $region12
      $region11: #{block_forward.5} parent=5 // pred_region
        %s279 = ssub.s32 %s19, 1
        // Predicated region
        $region13: #{block_forward.5} parent=11 // pred_check
          %p280 = pneg %p92
        $region14: #{block_forward.5} parent=11 // pred_check_branch
          %282 = sbr.rel (%p280) target = $region16
        $region15: #{block_forward.5} parent=11 // pred_region
          _
        $region16: #{block_forward.5} parent=11 // pred_fallthru
          _
        // Predicated region
        $region17: #{block_forward.5} parent=11 // pred_check
          %p283 = pneg %p113
        $region18: #{block_forward.5} parent=11 // pred_check_branch
          %285 = sbr.rel (%p283) target = $region20
        $region19: #{block_forward.5} parent=11 // pred_region
          _
        $region20: #{block_forward.5} parent=11 // pred_fallthru
          _
        // Predicated region
        $region21: #{block_forward.5} parent=11 // pred_check
          %p286 = pneg %p134
        $region22: #{block_forward.5} parent=11 // pred_check_branch
          %288 = sbr.rel (%p286) target = $region24
        $region23: #{block_forward.5} parent=11 // pred_region
          _
        $region24: #{block_forward.5} parent=11 // pred_fallthru
          _
        // Predicated region
        $region25: #{block_forward.5} parent=11 // pred_check
          %p289 = pneg %p155
        $region26: #{block_forward.5} parent=11 // pred_check_branch
          %291 = sbr.rel (%p289) target = $region28
        $region27: #{block_forward.5} parent=11 // pred_region
          _
        $region28: #{block_forward.5} parent=11 // pred_fallthru
          _
        // Predicated region
        $region29: #{block_forward.5} parent=11 // pred_check
          %p292 = pneg %p176
        $region30: #{block_forward.5} parent=11 // pred_check_branch
          %294 = sbr.rel (%p292) target = $region32
        $region31: #{block_forward.5} parent=11 // pred_region
          _
        $region32: #{block_forward.5} parent=11 // pred_fallthru
          _
        // Predicated region
        $region33: #{block_forward.5} parent=11 // pred_check
          %p295 = pneg %p197
        $region34: #{block_forward.5} parent=11 // pred_check_branch
          %297 = sbr.rel (%p295) target = $region36
        $region35: #{block_forward.5} parent=11 // pred_region
          _
        $region36: #{block_forward.5} parent=11 // pred_fallthru
          _
        // Predicated region
        $region37: #{block_forward.5} parent=11 // pred_check
          %p298 = pneg %p218
        $region38: #{block_forward.5} parent=11 // pred_check_branch
          %300 = sbr.rel (%p298) target = $region40
        $region39: #{block_forward.5} parent=11 // pred_region
          _
        $region40: #{block_forward.5} parent=11 // pred_fallthru
          _
        // Predicated region
        $region41: #{block_forward.5} parent=11 // pred_check
          %p301 = pneg %p239
        $region42: #{block_forward.5} parent=11 // pred_check_branch
          %303 = sbr.rel (%p301) target = $region44
        $region43: #{block_forward.5} parent=11 // pred_region
          _
        $region44: #{block_forward.5} parent=11 // pred_fallthru
          _
      $region12: #{block_forward.5} parent=5 // pred_fallthru
        _
      %p304 = scmp.lt.s32.totalorder %s19, 2
      // Predicated region
      $region45: #{block_forward.5} parent=5 // pred_check
        %p305 = pneg %p304
      $region46: #{block_forward.5} parent=5 // pred_check_branch
        %307 = sbr.rel (%p305) target = $region48
      $region47: #{block_forward.5} parent=5 // pred_region
        // Predicated region
        $region49: #{block_forward.5} parent=47 // pred_check
          %p308 = pneg %p39
        $region50: #{block_forward.5} parent=47 // pred_check_branch
          %310 = sbr.rel (%p308) target = $region52
        $region51: #{block_forward.5} parent=47 // pred_region
          %p311 = scmp.lt.s32.totalorder %s19, 1
          %s312 = scalar_select %p311, %s19, 1
          %s313 = smul.addr %s312, 8
          %s314 = scalar_lea.vmem %s0, %s313
        $region52: #{block_forward.5} parent=47 // pred_fallthru
          _
        // Predicated region
        $region53: #{block_forward.5} parent=47 // pred_check
          %p315 = pneg %p65
        $region54: #{block_forward.5} parent=47 // pred_check_branch
          %317 = sbr.rel (%p315) target = $region56
        $region55: #{block_forward.5} parent=47 // pred_region
          %p318 = scmp.lt.s32.totalorder %s19, 1
          %s319 = scalar_select %p318, %s19, 1
          %s320 = smul.addr %s319, 4
          %s321 = scalar_lea.vmem %s1, %s320
        $region56: #{block_forward.5} parent=47 // pred_fallthru
          _
      $region48: #{block_forward.5} parent=5 // pred_fallthru
        _
      %p322 = scmp.le.s32.totalorder 1, %s19
      %p323 = scmp.lt.s32.totalorder %s19, 3
      %p324 = pnand %p322, %p323
      %p325 = pneg %p324
      // Predicated region
      $region57: #{block_forward.5} parent=5 // pred_check
        _
      $region58: #{block_forward.5} parent=5 // pred_check_branch
        %327 = sbr.rel (%p324) target = $region60
      $region59: #{block_forward.5} parent=5 // pred_region
        %s328 = ssub.s32 %s19, 1
        %p329 = scmp.lt.s32.totalorder %s24, 1
        %s330 = scalar_select %p329, %s24, 1
        %s331 = smul.addr %s330, 8
        %s332 = scalar_lea.vmem %s0, %s331
        %p333 = pneg %p45
        %p334 = pneg %p42
        %p335 = scmp.lt.s32.totalorder %s24, 1
        %s336 = scalar_select %p335, %s24, 1
        %s337 = smul.addr %s336, 4
        %s338 = scalar_lea.vmem %s1, %s337
        %p339 = pneg %p71
        %p340 = pneg %p68
        %p341 = pneg %p92
        %p342 = pneg %p89
        %p343 = pneg %p113
        %p344 = pneg %p110
        %p345 = pneg %p134
        %p346 = pneg %p131
        %p347 = pneg %p155
        %p348 = pneg %p152
        %p349 = pneg %p176
        %p350 = pneg %p173
        %p351 = pneg %p197
        %p352 = pneg %p194
        %p353 = pneg %p218
        %p354 = pneg %p215
        %p355 = pneg %p239
        %p356 = pneg %p236
        %p357 = pneg %p265
        %p358 = pneg %p262
        %s359 = sand.u32 %s252, 1
        %s360 = scalar_lea.sflag [#allocation3], %s359
        %s361 = sand.u32 %s252, 1
        %s362 = smul.addr %s361, 8
        %s363 = scalar_lea.vmem [#allocation2], %s362
        %p364 = scmp.lt.s32.totalorder %s24, 1
        %s365 = scalar_select %p364, %s24, 1
        %s366 = smul.addr %s365, 8
        %s367 = scalar_lea.vmem %s0, %s366
        %p368 = scmp.lt.s32.totalorder %s24, 1
        %s369 = scalar_select %p368, %s24, 1
        %s370 = smul.addr %s369, 4
        %s371 = scalar_lea.vmem %s1, %s370
        %v373 = vld [vmem:[%s367] sm:$0xff]
        %v374 = vld [vmem:[%s371] sm:$0xf]
        %v375 = vld [vmem:[%s2] sm:$0xf]
        %v376 = vld [vmem:[%s2 + $0x4] sm:$0xf]
        %v377 = vld [vmem:[%s2 + $0x8] sm:$0xf]
        %v378 = vld [vmem:[%s2 + $0xc] sm:$0xf]
        %v383 = vunpack.c.l.b16 %v375
        %v384 = vunpack.c.l.b16 %v376
        %v385 = vunpack.c.l.b16 %v377
        %v386 = vunpack.c.l.b16 %v378
        %v387 = vpack.c.b16 %v384, %v383
        %v388 = vpack.c.b16 %v386, %v385
        %vm391 = vcmask 261120
        %v393 = vsel %vm391, %v374, 0
        %395 = vmatprep.subr.bf16.mxu0 0
        %396 = vmatpush1.bf16.msra.mxu0 0
        %397 = vmatprep.subr.bf16.mxu0 0
        %398 = vmatpush1.bf16.msra.mxu0 0
        %399 = vmatprep.subr.bf16.mxu0 0
        %400 = vmatpush1.bf16.msra.mxu0 0
        %401 = vmatprep.subr.bf16.mxu0 0
        %402 = vmatpush1.bf16.msra.mxu0 0
        %403 = vmatprep.subr.bf16.mxu0 0
        %404 = vmatpush1.bf16.msra.mxu0 0
        %405 = vmatprep.subr.bf16.mxu0 0
        %406 = vmatpush1.bf16.msra.mxu0 0
        %407 = vmatprep.subr.bf16.mxu0 0
        %408 = vmatpush1.bf16.msra.mxu0 %v388
        %409 = vmatprep.subr.bf16.mxu0 0
        %410 = vmatpush1.bf16.msra.mxu0 %v387
        %411 = vmatprep.subr.bf16.mxu0 0
        %412 = vmatpush2.bf16.msra.mxu0 0
        %413 = vmatprep.subr.bf16.mxu0 0
        %414 = vmatpush2.bf16.msra.mxu0 0
        %415 = vmatprep.subr.bf16.mxu0 0
        %416 = vmatpush2.bf16.msra.mxu0 0
        %417 = vmatprep.subr.bf16.mxu0 0
        %418 = vmatpush2.bf16.msra.mxu0 0
        %419 = vmatprep.subr.bf16.mxu0 0
        %420 = vmatpush2.bf16.msra.mxu0 0
        %421 = vmatprep.subr.bf16.mxu0 0
        %422 = vmatpush2.bf16.msra.mxu0 0
        %423 = vmatprep.subr.bf16.mxu0 0
        %424 = vmatpush2.bf16.msra.mxu0 0
        %425 = vmatprep.subr.bf16.mxu0 0
        %426 = vmatpush2.bf16.msra.mxu0 0
        %427 = vmatprep.mubr.bf16.mxu0 0
        %428 = vmatmul.mubr.bf16.gmra.mxu0 %v393
        %v429 = vpop.f32.mrf.mxu0
        %v430 = vadd.f32 0.0, %v429
        %v431 = vpop.f32.mrf.mxu0
        %v432 = vpop.f32.mrf.mxu0
        %v433 = vpop.f32.mrf.mxu0
        %434 = vdwg.mxu0
        %v435 = vadd.f32 %v373, %v430
        %v436 = vld [vmem:[%s3] sm:$0x1]
        %v438 = vlaneseq
        %v439 = vshrl.u32 %v438, 7
        %v440 = vsub.s32 0, %v439
        %v441 = vrot.slane %v436, %v440
        %v443 = vadd.f32 %v435, %v441
        %v444 = vld [vmem:[%s4] sm:$0x1]
        %v445 = vld [vmem:[%s5] sm:$0x1]
        %v446 = vsel %vm391, %v443, 0.0
        %447 = vadd.xlane.f32.xlu0 %v446
        %v448 = vpop.xlane.xlu0 %447
        %v449 = vrcp.pop 32.0
        %v450 = vmul.f32 %v448, %v449
        %v451 = vsub.f32 %v443, %v450
        %v452 = vmul.f32 %v451, %v451
        %v453 = vsel %vm391, %v452, 0.0
        %454 = vadd.xlane.f32.xlu0 %v453
        %v455 = vpop.xlane.xlu0 %454
        %v456 = vmul.f32 %v455, %v449
        %v457 = vadd.f32 %v456, 1e-05
        %v458 = vrsqrt.pop %v457
        %v459 = vmul.f32 %v451, %v458
        %v461 = vlaneseq
        %v462 = vshrl.u32 %v461, 7
        %v463 = vsub.s32 0, %v462
        %v464 = vrot.slane %v444, %v463
        %v466 = vmul.f32 %v459, %v464
        %v468 = vlaneseq
        %v469 = vshrl.u32 %v468, 7
        %v470 = vsub.s32 0, %v469
        %v471 = vrot.slane %v445, %v470
        %v473 = vadd.f32 %v466, %v471
        %v474 = vpack.c.bf16 %v473, %v473
        %v475 = vld [vmem:[%s6] sm:$0xf]
        %v476 = vld [vmem:[%s6 + $0x4] sm:$0xf]
        %v477 = vld [vmem:[%s6 + $0x8] sm:$0xf]
        %v478 = vld [vmem:[%s6 + $0xc] sm:$0xf]
        %v479 = vld [vmem:[%s7] sm:$0x1]
        %v481 = vlaneseq
        %v482 = vshrl.u32 %v481, 7
        %v483 = vsub.s32 0, %v482
        %v484 = vrot.slane %v479, %v483
        %v490 = vunpack.c.l.b16 %v475
        %v491 = vunpack.c.l.b16 %v476
        %v492 = vunpack.c.l.b16 %v477
        %v493 = vunpack.c.l.b16 %v478
        %v494 = vpack.c.b16 %v491, %v490
        %v495 = vpack.c.b16 %v493, %v492
        %v499 = vsel %vm391, %v474, 0
        %501 = vmatprep.subr.bf16.mxu0 0
        %502 = vmatpush1.bf16.msra.mxu0 0
        %503 = vmatprep.subr.bf16.mxu0 0
        %504 = vmatpush1.bf16.msra.mxu0 0
        %505 = vmatprep.subr.bf16.mxu0 0
        %506 = vmatpush1.bf16.msra.mxu0 0
        %507 = vmatprep.subr.bf16.mxu0 0
        %508 = vmatpush1.bf16.msra.mxu0 0
        %509 = vmatprep.subr.bf16.mxu0 0
        %510 = vmatpush1.bf16.msra.mxu0 0
        %511 = vmatprep.subr.bf16.mxu0 0
        %512 = vmatpush1.bf16.msra.mxu0 0
        %513 = vmatprep.subr.bf16.mxu0 0
        %514 = vmatpush1.bf16.msra.mxu0 %v495
        %515 = vmatprep.subr.bf16.mxu0 0
        %516 = vmatpush1.bf16.msra.mxu0 %v494
        %517 = vmatprep.subr.bf16.mxu0 0
        %518 = vmatpush2.bf16.msra.mxu0 0
        %519 = vmatprep.subr.bf16.mxu0 0
        %520 = vmatpush2.bf16.msra.mxu0 0
        %521 = vmatprep.subr.bf16.mxu0 0
        %522 = vmatpush2.bf16.msra.mxu0 0
        %523 = vmatprep.subr.bf16.mxu0 0
        %524 = vmatpush2.bf16.msra.mxu0 0
        %525 = vmatprep.subr.bf16.mxu0 0
        %526 = vmatpush2.bf16.msra.mxu0 0
        %527 = vmatprep.subr.bf16.mxu0 0
        %528 = vmatpush2.bf16.msra.mxu0 0
        %529 = vmatprep.subr.bf16.mxu0 0
        %530 = vmatpush2.bf16.msra.mxu0 0
        %531 = vmatprep.subr.bf16.mxu0 0
        %532 = vmatpush2.bf16.msra.mxu0 0
        %533 = vmatprep.mubr.bf16.mxu0 0
        %534 = vmatmul.mubr.bf16.gmra.mxu0 %v499
        %v535 = vpop.f32.mrf.mxu0
        %v536 = vadd.f32 %v484, %v535
        %v537 = vpop.f32.mrf.mxu0
        %v538 = vpop.f32.mrf.mxu0
        %v539 = vpop.f32.mrf.mxu0
        %540 = vdwg.mxu0
        %v541 = vmul.f32 %v536, 0.5
        %v542 = vmul.f32 %v536, 0.70710677
        %v543 = vand.u32 2147483647, %v542
        %v544 = vmul.f32 %v543, 0.3275911
        %v545 = vadd.f32 %v544, 1.0
        %v546 = vrcp.pop %v545
        %v547 = vmul.f32 1.0, %v546
        %v548 = vmul.f32 %v547, 1.0614054
        %v549 = vadd.f32 %v548, -1.4531521
        %v550 = vmul.f32 %v547, %v549
        %v551 = vadd.f32 %v550, 1.4214138
        %v552 = vmul.f32 %v547, %v551
        %v553 = vadd.f32 %v552, -0.28449672
        %v554 = vmul.f32 %v547, %v553
        %v555 = vadd.f32 %v554, 0.2548296
        %v556 = vmul.f32 %v547, %v555
        %v557 = vsub.f32 0.0, %v543
        %v558 = vmul.f32 %v557, %v543
        %v559 = vmul.f32 %v558, 1.442695
        %v560 = vpow.pop %v559
        %v561 = vmul.f32 %v556, %v560
        %v562 = vsub.f32 1.0, %v561
        %vm563 = vcmp.lt.f32.partialorder %v542, 0.0
        %v564 = vsub.f32 0.0, %v562
        %v565 = vsel %vm563, %v564, %v562
        %v566 = vadd.f32 %v565, 1.0
        %v567 = vmul.f32 %v541, %v566
        %v568 = vpack.c.bf16 %v567, %v567
        %v569 = vld [vmem:[%s8] sm:$0xf]
        %v570 = vld [vmem:[%s8 + $0x4] sm:$0xf]
        %v571 = vld [vmem:[%s8 + $0x8] sm:$0xf]
        %v572 = vld [vmem:[%s8 + $0xc] sm:$0xf]
        %v573 = vld [vmem:[%s8 + $0x10] sm:$0xf]
        %v574 = vld [vmem:[%s8 + $0x14] sm:$0xf]
        %v575 = vld [vmem:[%s8 + $0x18] sm:$0xf]
        %v576 = vld [vmem:[%s8 + $0x1c] sm:$0xf]
        %v577 = vld [vmem:[%s8 + $0x20] sm:$0xf]
        %v578 = vld [vmem:[%s8 + $0x24] sm:$0xf]
        %v579 = vld [vmem:[%s8 + $0x28] sm:$0xf]
        %v580 = vld [vmem:[%s8 + $0x2c] sm:$0xf]
        %v581 = vld [vmem:[%s8 + $0x30] sm:$0xf]
        %v582 = vld [vmem:[%s8 + $0x34] sm:$0xf]
        %v583 = vld [vmem:[%s8 + $0x38] sm:$0xf]
        %v584 = vld [vmem:[%s8 + $0x3c] sm:$0xf]
        %v601 = vunpack.c.l.b16 %v569
        %v602 = vunpack.c.l.b16 %v570
        %v603 = vunpack.c.l.b16 %v571
        %v604 = vunpack.c.l.b16 %v572
        %v605 = vunpack.c.l.b16 %v573
        %v606 = vunpack.c.l.b16 %v574
        %v607 = vunpack.c.l.b16 %v575
        %v608 = vunpack.c.l.b16 %v576
        %v609 = vunpack.c.l.b16 %v577
        %v610 = vunpack.c.l.b16 %v578
        %v611 = vunpack.c.l.b16 %v579
        %v612 = vunpack.c.l.b16 %v580
        %v613 = vunpack.c.l.b16 %v581
        %v614 = vunpack.c.l.b16 %v582
        %v615 = vunpack.c.l.b16 %v583
        %v616 = vunpack.c.l.b16 %v584
        %v617 = vpack.c.b16 %v602, %v601
        %v618 = vpack.c.b16 %v604, %v603
        %v619 = vpack.c.b16 %v606, %v605
        %v620 = vpack.c.b16 %v608, %v607
        %v621 = vpack.c.b16 %v610, %v609
        %v622 = vpack.c.b16 %v612, %v611
        %v623 = vpack.c.b16 %v614, %v613
        %v624 = vpack.c.b16 %v616, %v615
        %633 = vmatprep.subr.bf16.mxu0 0
        %634 = vmatpush1.bf16.msra.mxu0 %v624
        %635 = vmatprep.subr.bf16.mxu0 0
        %636 = vmatpush1.bf16.msra.mxu0 %v623
        %637 = vmatprep.subr.bf16.mxu0 0
        %638 = vmatpush1.bf16.msra.mxu0 %v622
        %639 = vmatprep.subr.bf16.mxu0 0
        %640 = vmatpush1.bf16.msra.mxu0 %v621
        %641 = vmatprep.subr.bf16.mxu0 0
        %642 = vmatpush1.bf16.msra.mxu0 %v620
        %643 = vmatprep.subr.bf16.mxu0 0
        %644 = vmatpush1.bf16.msra.mxu0 %v619
        %645 = vmatprep.subr.bf16.mxu0 0
        %646 = vmatpush1.bf16.msra.mxu0 %v618
        %647 = vmatprep.subr.bf16.mxu0 0
        %648 = vmatpush1.bf16.msra.mxu0 %v617
        %649 = vmatprep.subr.bf16.mxu0 0
        %650 = vmatpush2.bf16.msra.mxu0 0
        %651 = vmatprep.subr.bf16.mxu0 0
        %652 = vmatpush2.bf16.msra.mxu0 0
        %653 = vmatprep.subr.bf16.mxu0 0
        %654 = vmatpush2.bf16.msra.mxu0 0
        %655 = vmatprep.subr.bf16.mxu0 0
        %656 = vmatpush2.bf16.msra.mxu0 0
        %657 = vmatprep.subr.bf16.mxu0 0
        %658 = vmatpush2.bf16.msra.mxu0 0
        %659 = vmatprep.subr.bf16.mxu0 0
        %660 = vmatpush2.bf16.msra.mxu0 0
        %661 = vmatprep.subr.bf16.mxu0 0
        %662 = vmatpush2.bf16.msra.mxu0 0
        %663 = vmatprep.subr.bf16.mxu0 0
        %664 = vmatpush2.bf16.msra.mxu0 0
        %665 = vmatprep.mubr.bf16.mxu0 0
        %666 = vmatmul.mubr.bf16.gmra.mxu0 %v568
        %v667 = vpop.f32.mrf.mxu0
        %v668 = vadd.f32 0.0, %v667
        %v669 = vpop.f32.mrf.mxu0
        %v670 = vpop.f32.mrf.mxu0
        %v671 = vpop.f32.mrf.mxu0
        %672 = vdwg.mxu0
        %v673 = vadd.f32 %v443, %v668
        %v674 = vld [vmem:[%s9] sm:$0x1]
        %v676 = vlaneseq
        %v677 = vshrl.u32 %v676, 7
        %v678 = vsub.s32 0, %v677
        %v679 = vrot.slane %v674, %v678
        %v681 = vadd.f32 %v673, %v679
        %682 = vst.msk [vmem:[%s363] sm:$0xff] %vm391, %v681
        %s683 = sand.u32 %s252, 1
        %s684 = scalar_lea.sflag [#allocation3], %s683
        %s685 = sand.u32 %s252, 1
        %s686 = smul.addr %s685, 8
        %s687 = scalar_lea.vmem [#allocation2], %s686
        // Predicated region
        $region61: #{block_forward.5} parent=59 // pred_check
          %p688 = pneg %p262
        $region62: #{block_forward.5} parent=59 // pred_check_branch
          %690 = sbr.rel (%p688) target = $region64
        $region63: #{block_forward.5} parent=59 // pred_region
          %s692 = ssub.s32 128, 128
          %693 = vsyncadd %s684, %s692
          %s694 = smul.addr %s24, 128
          %s695 = scalar_lea.hbm %s10, %s694
          %s697 = sshll.u32 %s687, 4
          %s698 = int_to_ptr.vmem [resolvable:$true] %s697
          %700 = dma.vmem_to_hbm [thread:$0]  %s698, 128, %s695, %s684
        $region64: #{block_forward.5} parent=59 // pred_fallthru
          _
      $region60: #{block_forward.5} parent=5 // pred_fallthru
        _
      %p701 = scmp.le.s32.totalorder 2, %s19
      // Predicated region
      $region65: #{block_forward.5} parent=5 // pred_check
        %p702 = pneg %p701
      $region66: #{block_forward.5} parent=5 // pred_check_branch
        %704 = sbr.rel (%p702) target = $region68
      $region67: #{block_forward.5} parent=5 // pred_region
        %s705 = ssub.s32 %s19, 2
        // Predicated region
        $region69: #{block_forward.5} parent=67 // pred_check
          %p706 = pneg %p268
        $region70: #{block_forward.5} parent=67 // pred_check_branch
          %708 = sbr.rel (%p706) target = $region72
        $region71: #{block_forward.5} parent=67 // pred_region
          %s709 = sand.u32 %s253, 1
          %s710 = scalar_lea.sflag [#allocation3], %s709
          %s711 = sand.u32 %s253, 1
          %s712 = smul.addr %s711, 8
          %s713 = scalar_lea.vmem [#allocation2], %s712
          %714 = dma.done %s710, 128
        $region72: #{block_forward.5} parent=67 // pred_fallthru
          _
      $region68: #{block_forward.5} parent=5 // pred_fallthru
        _
    $region6: #{block_forward.5} parent=1 // loop_footer
      %s23 = sadd.s32 1, %s19
    $region7: #{block_forward.5} parent=1 // loop_footer_branch
      %18 = sbr.rel target = $region3
    $region8: #{block_forward.5} parent=1 // loop_exit
      _
    %715 = vsyncpa [#allocation3], 1
    %s716 = scalar_lea.sflag [#allocation3], 1
    %717 = vsyncpa %s716, 1

</llo_original>
